<compile_context>
chip_gen: v6e
topology: v6e:2x2x1
jax: 0.10.0
libtpu: 0.0.40
codegen_flags: <defaults>
</compile_context>

<pallas_src>
import functools

import jax
import jax.numpy as jnp
from jax.experimental import pallas as pl
from jax.experimental.pallas import tpu as pltpu

# ----------------------------------------------------------------------------
# Hyper-parameters (small, but hidden dims match the real module: projector is
# Linear(768, 1024) as in __init__).
# ----------------------------------------------------------------------------
B = 2            # batch
C_IN = 3         # image channels
IMG = 16         # spatial size
PATCH = 8        # patch size -> 2x2 = 4 patches per image
GRID_HW = IMG // PATCH
N_PATCH = GRID_HW * GRID_HW
VIS_TOK = 1 + N_PATCH
VIS_HID = 1024   # CLIP-large hidden size
TXT_HID = 768    # SciBERT hidden size
SEQ_TXT = 8      # metadata token length
VOCAB = 64
P_DROP = 0.1     # text_dropout_p
PROJ_TN = 512    # projector column tile: 2 blocks -> both v7x TensorCores

_VMEM_LIMIT = 64 * 1024 * 1024  # explicit budget, safe for v7x's 64 MiB VMEM


# ----------------------------------------------------------------------------
# Fused vision kernel: patch-embed matmul + cls token + pos add + layernorm
# ----------------------------------------------------------------------------
def vision_fused_kernel(patch_ref, w_ref, b_ref, cls_ref, pos_ref, g_ref,
                        bb_ref, o_ref):
    # Patch-embedding matmul on the MXU (bf16 operands, f32 accumulate).
    pe = jnp.dot(patch_ref[0].astype(jnp.bfloat16), w_ref[...],
                 preferred_element_type=jnp.float32) + b_ref[...]
    pos = pos_ref[...]
    x_cls = cls_ref[...] + pos[0:1, :]          # (1, H)
    x_pat = pe + pos[1:, :]                     # (N_PATCH, H)
    gamma = g_ref[...]
    beta = bb_ref[...]

    def _ln(x):
        mu = jnp.mean(x, axis=-1, keepdims=True)
        var = jnp.mean((x - mu) * (x - mu), axis=-1, keepdims=True)
        return (x - mu) * jax.lax.rsqrt(var + 1e-5) * gamma + beta

    o_ref[0, 0:1, :] = _ln(x_cls).astype(o_ref.dtype)
    o_ref[0, 1:, :] = _ln(x_pat).astype(o_ref.dtype)


def pallas_vision_encoder(patches, patch_w, patch_b, cls_emb, vis_pos,
                          ln_g, ln_b):
    b, n_patch, kdim = patches.shape
    hid = patch_w.shape[1]
    n_tok = n_patch + 1
    return pl.pallas_call(
        vision_fused_kernel,
        out_shape=jax.ShapeDtypeStruct((b, n_tok, hid), jnp.float32),
        grid=(b,),
        in_specs=[
            pl.BlockSpec((1, n_patch, kdim), lambda i: (i, 0, 0)),
            pl.BlockSpec((kdim, hid), lambda i: (0, 0)),
            pl.BlockSpec((1, hid), lambda i: (0, 0)),
            pl.BlockSpec((1, hid), lambda i: (0, 0)),
            pl.BlockSpec((n_tok, hid), lambda i: (0, 0)),
            pl.BlockSpec((1, hid), lambda i: (0, 0)),
            pl.BlockSpec((1, hid), lambda i: (0, 0)),
        ],
        out_specs=pl.BlockSpec((1, n_tok, hid), lambda i: (i, 0, 0)),
        compiler_params=pltpu.CompilerParams(
            dimension_semantics=("parallel",),
            vmem_limit_bytes=_VMEM_LIMIT),
    )(patches, patch_w, patch_b.reshape(1, hid), cls_emb.reshape(1, hid),
      vis_pos, ln_g.reshape(1, hid), ln_b.reshape(1, hid))


# ----------------------------------------------------------------------------
# Fused text kernel: dense+tanh+mask (SciBERT stand-in) + dropout + projector
# ----------------------------------------------------------------------------
def _uniform_bits24(seed_u32, shape):
    """Counter-based integer hash -> 24-bit uniform ints in [0, 2^24)."""
    r = jax.lax.broadcasted_iota(jnp.uint32, shape, 0)
    c = jax.lax.broadcasted_iota(jnp.uint32, shape, 1)
    x = (r * jnp.uint32(0x9E3779B1)) ^ (c * jnp.uint32(0x85EBCA77)) ^ seed_u32
    x = x ^ (x >> jnp.uint32(16))
    x = x * jnp.uint32(0x7FEB352D)
    x = x ^ (x >> jnp.uint32(15))
    x = x * jnp.uint32(0x846CA68B)
    x = x ^ (x >> jnp.uint32(16))
    return (x >> jnp.uint32(8)).astype(jnp.int32)


def text_fused_kernel(emb_ref, mask_ref, tw_ref, tb_ref, pw_ref, pb_ref,
                      seed_ref, o_ref, *, p, apply_dropout):
    # Synthetic SciBERT stand-in: h = tanh(emb @ W + b) * attention_mask
    h = jnp.dot(emb_ref[...].astype(jnp.bfloat16), tw_ref[...],
                preferred_element_type=jnp.float32)
    h = jnp.tanh(h + tb_ref[...]) * mask_ref[...]
    if apply_dropout:
        # nn.Dropout(p): integer threshold compare, no float convert.
        seed = seed_ref[0].astype(jnp.uint32)
        bits24 = _uniform_bits24(seed, h.shape)
        thr = jnp.int32(int(round(p * float(1 << 24))))
        h = jnp.where(bits24 >= thr, h * (1.0 / (1.0 - p)), 0.0)
    # Projector nn.Linear(768, 1024) (column-tiled over the grid axis).
    acc = jnp.dot(h.astype(jnp.bfloat16), pw_ref[...],
                  preferred_element_type=jnp.float32)
    o_ref[...] = (acc + pb_ref[...]).astype(o_ref.dtype)


def pallas_text_project(emb, mask, txt_w, txt_b, proj_w, proj_b, seed, *,
                        p, training):
    rows, k = emb.shape
    n = proj_w.shape[1]
    tn = PROJ_TN if n % PROJ_TN == 0 else n
    kernel = functools.partial(text_fused_kernel, p=float(p),
                               apply_dropout=bool(training) and p > 0.0)
    seed_arr = jnp.asarray([seed], dtype=jnp.int32)
    return pl.pallas_call(
        kernel,
        out_shape=jax.ShapeDtypeStruct((rows, n), jnp.float32),
        grid=(n // tn,),
        in_specs=[
            pl.BlockSpec((rows, k), lambda j: (0, 0)),
            pl.BlockSpec((rows, 1), lambda j: (0, 0)),
            pl.BlockSpec((k, k), lambda j: (0, 0)),
            pl.BlockSpec((1, k), lambda j: (0, 0)),
            pl.BlockSpec((k, tn), lambda j: (0, j)),
            pl.BlockSpec((1, tn), lambda j: (0, j)),
            pl.BlockSpec(memory_space=pltpu.MemorySpace.SMEM),
        ],
        out_specs=pl.BlockSpec((rows, tn), lambda j: (0, j)),
        compiler_params=pltpu.CompilerParams(
            dimension_semantics=("parallel",),
            vmem_limit_bytes=_VMEM_LIMIT),
    )(emb, mask, txt_w, txt_b.reshape(1, k), proj_w, proj_b.reshape(1, n),
      seed_arr)


# ----------------------------------------------------------------------------
# Parameter init (deterministic, synthetic) and forward pass
# ----------------------------------------------------------------------------
def init_params(key):
    ks = jax.random.split(key, 8)
    s = 0.02
    return {
        # synthetic CLIP vision tower (weights stored bf16 for the MXU)
        "patch_w": (jax.random.normal(ks[0], (C_IN * PATCH * PATCH, VIS_HID),
                                      jnp.float32) * s).astype(jnp.bfloat16),
        "patch_b": jnp.zeros((VIS_HID,), jnp.float32),
        "cls_emb": jax.random.normal(ks[1], (VIS_HID,), jnp.float32) * s,
        "vis_pos": jax.random.normal(ks[2], (VIS_TOK, VIS_HID), jnp.float32) * s,
        "vis_ln_g": jnp.ones((VIS_HID,), jnp.float32),
        "vis_ln_b": jnp.zeros((VIS_HID,), jnp.float32),
        # synthetic SciBERT text tower
        "word_emb": jax.random.normal(ks[3], (VOCAB, TXT_HID), jnp.float32) * s,
        "pos_emb": jax.random.normal(ks[4], (SEQ_TXT, TXT_HID), jnp.float32) * s,
        "type_emb": jax.random.normal(ks[5], (2, TXT_HID), jnp.float32) * s,
        "txt_w": (jax.random.normal(ks[6], (TXT_HID, TXT_HID),
                                    jnp.float32) * s).astype(jnp.bfloat16),
        "txt_b": jnp.zeros((TXT_HID,), jnp.float32),
        # module-owned projector: nn.Linear(768, 1024)
        "proj_w": (jax.random.normal(ks[7], (TXT_HID, VIS_HID),
                                     jnp.float32) * s).astype(jnp.bfloat16),
        "proj_b": jnp.zeros((VIS_HID,), jnp.float32),
    }


def extensible_encoder_forward(params, pixel_values, input_ids,
                               attention_mask, token_type_ids, *,
                               dropout_seed, training=True):
    # ---- vision path (stand-in for self.clip(pixel_values)) ---------------
    b, c, h, w = pixel_values.shape
    gh, gw = h // PATCH, w // PATCH
    # im2col glue: NCHW -> [B, n_patches, C*P*P]
    # TODO(synk): at real CLIP resolution form patches via BlockSpec index_map
    # DMA instead of a standalone HBM transpose.
    patches = pixel_values.reshape(b, c, gh, PATCH, gw, PATCH)
    patches = patches.transpose(0, 2, 4, 1, 3, 5).reshape(
        b, gh * gw, c * PATCH * PATCH)

    image_hidden = pallas_vision_encoder(
        patches, params["patch_w"], params["patch_b"], params["cls_emb"],
        params["vis_pos"], params["vis_ln_g"], params["vis_ln_b"])

    # ---- text path (stand-in for self.metadata_encoder(...)) --------------
    emb = (jnp.take(params["word_emb"], input_ids, axis=0)
           + params["pos_emb"][None]
           + jnp.take(params["type_emb"], token_type_ids, axis=0))
    emb_flat = emb.reshape(b * SEQ_TXT, TXT_HID)
    mask_flat = attention_mask.astype(jnp.float32).reshape(b * SEQ_TXT, 1)

    # ---- fused: text encoder + self.text_dropout + self.projector ---------
    proj_flat = pallas_text_project(
        emb_flat, mask_flat, params["txt_w"], params["txt_b"],
        params["proj_w"], params["proj_b"], dropout_seed,
        p=P_DROP, training=training)
    proj = proj_flat.reshape(b, SEQ_TXT, VIS_HID)

    # ---- torch.cat([image.last_hidden_state, projected_text], dim=1) ------
    return jnp.concatenate([image_hidden, proj], axis=1)


if __name__ == "__main__":
    key = jax.random.PRNGKey(0)
    k_param, k_img, k_ids = jax.random.split(key, 3)
    params = init_params(k_param)

    pixel_values = jax.random.normal(k_img, (B, C_IN, IMG, IMG), jnp.float32)
    input_ids = jax.random.randint(k_ids, (B, SEQ_TXT), 0, VOCAB, dtype=jnp.int32)
    attention_mask = jnp.array([[1] * SEQ_TXT,
                                [1] * (SEQ_TXT - 2) + [0] * 2], dtype=jnp.int32)
    token_type_ids = jnp.zeros((B, SEQ_TXT), dtype=jnp.int32)

    # training=True matches a freshly-constructed nn.Module (dropout active);
    # training=False gives the eval no-op dropout path.
    out = extensible_encoder_forward(params, pixel_values, input_ids,
                                     attention_mask, token_type_ids,
                                     dropout_seed=0, training=True)
    out = jax.block_until_ready(out)
    assert out.shape == (B, VIS_TOK + SEQ_TXT, VIS_HID), out.shape
    assert bool(jnp.all(jnp.isfinite(out)))

    out_eval = extensible_encoder_forward(params, pixel_values, input_ids,
                                          attention_mask, token_type_ids,
                                          dropout_seed=0, training=False)
    out_eval = jax.block_until_ready(out_eval)
    assert out_eval.shape == (B, VIS_TOK + SEQ_TXT, VIS_HID)
    assert bool(jnp.all(jnp.isfinite(out_eval)))
    print("KERNEL_OK")
</pallas_src>

<mosaic_0001>
module attributes {stable_mosaic.version = 11 : i64} {
  func.func @vision_fused_kernel(%arg0: i32, %arg1: memref<1x4x192xf32, #tpu.memory_space<vmem>>, %arg2: memref<192x1024xbf16, #tpu.memory_space<vmem>>, %arg3: memref<1x1024xf32, #tpu.memory_space<vmem>>, %arg4: memref<1x1024xf32, #tpu.memory_space<vmem>>, %arg5: memref<5x1024xf32, #tpu.memory_space<vmem>>, %arg6: memref<1x1024xf32, #tpu.memory_space<vmem>>, %arg7: memref<1x1024xf32, #tpu.memory_space<vmem>>, %arg8: memref<1x5x1024xf32, #tpu.memory_space<vmem>>) attributes {dimension_semantics = [#tpu.dimension_semantics<parallel>], iteration_bounds = array<i64: 2>, scalar_prefetch = 0 : i64, scratch_operands = 0 : i64, tpu.core_type = #tpu.core_type<tc>, window_params = [{transform_indices = @transform_0, window_bounds = array<i64: 1, 4, 192>}, {pipeline_mode = #tpu.pipeline_mode<synchronous>, transform_indices = @transform_1, window_bounds = array<i64: 192, 1024>}, {pipeline_mode = #tpu.pipeline_mode<synchronous>, transform_indices = @transform_2, window_bounds = array<i64: 1, 1024>}, {pipeline_mode = #tpu.pipeline_mode<synchronous>, transform_indices = @transform_3, window_bounds = array<i64: 1, 1024>}, {pipeline_mode = #tpu.pipeline_mode<synchronous>, transform_indices = @transform_4, window_bounds = array<i64: 5, 1024>}, {pipeline_mode = #tpu.pipeline_mode<synchronous>, transform_indices = @transform_5, window_bounds = array<i64: 1, 1024>}, {pipeline_mode = #tpu.pipeline_mode<synchronous>, transform_indices = @transform_6, window_bounds = array<i64: 1, 1024>}, {transform_indices = @transform_7, window_bounds = array<i64: 1, 5, 1024>}]} {
    %c0 = arith.constant 0 : index
    %c0_0 = arith.constant 0 : index
    %c0_1 = arith.constant 0 : index
    %0 = vector.load %arg1[%c0, %c0_0, %c0_1] : memref<1x4x192xf32, #tpu.memory_space<vmem>>, vector<1x4x192xf32>
    %1 = vector.shape_cast %0 : vector<1x4x192xf32> to vector<4x192xf32>
    %2 = arith.truncf %1 : vector<4x192xf32> to vector<4x192xbf16>
    %c0_2 = arith.constant 0 : index
    %c0_3 = arith.constant 0 : index
    %3 = vector.load %arg2[%c0_2, %c0_3] : memref<192x1024xbf16, #tpu.memory_space<vmem>>, vector<192x1024xbf16>
    %cst = arith.constant dense<0.000000e+00> : vector<4x1024xf32>
    %4 = tpu.matmul %2, %3, %cst {dimension_numbers = #tpu.dot_dimension_numbers<[1], [0], [0], [1], [0, 0, 1, 1], [], []>} : vector<4x192xbf16>, vector<192x1024xbf16>, vector<4x1024xf32> -> vector<4x1024xf32>
    %c0_4 = arith.constant 0 : index
    %c0_5 = arith.constant 0 : index
    %5 = vector.load %arg3[%c0_4, %c0_5] : memref<1x1024xf32, #tpu.memory_space<vmem>>, vector<1x1024xf32>
    %6 = vector.broadcast %5 : vector<1x1024xf32> to vector<4x1024xf32>
    %7 = arith.addf %4, %6 : vector<4x1024xf32>
    %c0_6 = arith.constant 0 : index
    %c0_7 = arith.constant 0 : index
    %8 = vector.load %arg5[%c0_6, %c0_7] : memref<5x1024xf32, #tpu.memory_space<vmem>>, vector<5x1024xf32>
    %c0_8 = arith.constant 0 : index
    %c0_9 = arith.constant 0 : index
    %9 = vector.load %arg4[%c0_8, %c0_9] : memref<1x1024xf32, #tpu.memory_space<vmem>>, vector<1x1024xf32>
    %10 = vector.extract_strided_slice %8 {offsets = [0, 0], sizes = [1, 1024], strides = [1, 1]} : vector<5x1024xf32> to vector<1x1024xf32>
    %11 = arith.addf %9, %10 : vector<1x1024xf32>
    %12 = vector.extract_strided_slice %8 {offsets = [1, 0], sizes = [4, 1024], strides = [1, 1]} : vector<5x1024xf32> to vector<4x1024xf32>
    %13 = arith.addf %7, %12 : vector<4x1024xf32>
    %c0_10 = arith.constant 0 : index
    %c0_11 = arith.constant 0 : index
    %14 = vector.load %arg6[%c0_10, %c0_11] : memref<1x1024xf32, #tpu.memory_space<vmem>>, vector<1x1024xf32>
    %c0_12 = arith.constant 0 : index
    %c0_13 = arith.constant 0 : index
    %15 = vector.load %arg7[%c0_12, %c0_13] : memref<1x1024xf32, #tpu.memory_space<vmem>>, vector<1x1024xf32>
    %cst_14 = arith.constant dense<0.000000e+00> : vector<1xf32>
    %16 = vector.multi_reduction <add>, %11, %cst_14 [1] : vector<1x1024xf32> to vector<1xf32>
    %17 = vector.shape_cast %16 : vector<1xf32> to vector<1x1xf32>
    %cst_15 = arith.constant 1.024000e+03 : f32
    %18 = vector.broadcast %cst_15 : f32 to vector<1x1xf32>
    %19 = arith.divf %17, %18 : vector<1x1xf32>
    %20 = vector.broadcast %19 : vector<1x1xf32> to vector<1x1024xf32>
    %21 = arith.subf %11, %20 : vector<1x1024xf32>
    %22 = vector.broadcast %19 : vector<1x1xf32> to vector<1x1024xf32>
    %23 = arith.subf %11, %22 : vector<1x1024xf32>
    %24 = arith.mulf %21, %23 : vector<1x1024xf32>
    %cst_16 = arith.constant dense<0.000000e+00> : vector<1xf32>
    %25 = vector.multi_reduction <add>, %24, %cst_16 [1] : vector<1x1024xf32> to vector<1xf32>
    %26 = vector.shape_cast %25 : vector<1xf32> to vector<1x1xf32>
    %cst_17 = arith.constant 1.024000e+03 : f32
    %27 = vector.broadcast %cst_17 : f32 to vector<1x1xf32>
    %28 = arith.divf %26, %27 : vector<1x1xf32>
    %29 = vector.broadcast %19 : vector<1x1xf32> to vector<1x1024xf32>
    %30 = arith.subf %11, %29 : vector<1x1024xf32>
    %cst_18 = arith.constant 9.99999974E-6 : f32
    %31 = vector.broadcast %cst_18 : f32 to vector<1x1xf32>
    %32 = arith.addf %28, %31 : vector<1x1xf32>
    %33 = math.rsqrt %32 : vector<1x1xf32>
    %34 = vector.broadcast %33 : vector<1x1xf32> to vector<1x1024xf32>
    %35 = arith.mulf %30, %34 : vector<1x1024xf32>
    %36 = arith.mulf %35, %14 : vector<1x1024xf32>
    %37 = arith.addf %36, %15 : vector<1x1024xf32>
    %c0_19 = arith.constant 0 : index
    %c0_20 = arith.constant 0 : index
    %c0_21 = arith.constant 0 : index
    %38 = vector.load %arg8[%c0_19, %c0_20, %c0_21] : memref<1x5x1024xf32, #tpu.memory_space<vmem>>, vector<1x1x1024xf32>
    %39 = vector.shape_cast %38 : vector<1x1x1024xf32> to vector<1x1024xf32>
    %40 = vector.shape_cast %37 : vector<1x1024xf32> to vector<1x1x1024xf32>
    tpu.vector_store %arg8[%c0_19, %c0_20, %c0_21], %40 {strides = array<i32>} : memref<1x5x1024xf32, #tpu.memory_space<vmem>>, vector<1x1x1024xf32>,
    %cst_22 = arith.constant dense<0.000000e+00> : vector<4xf32>
    %41 = vector.multi_reduction <add>, %13, %cst_22 [1] : vector<4x1024xf32> to vector<4xf32>
    %42 = vector.shape_cast %41 : vector<4xf32> to vector<4x1xf32>
    %cst_23 = arith.constant 1.024000e+03 : f32
    %43 = vector.broadcast %cst_23 : f32 to vector<4x1xf32>
    %44 = arith.divf %42, %43 : vector<4x1xf32>
    %45 = vector.broadcast %44 : vector<4x1xf32> to vector<4x1024xf32>
    %46 = arith.subf %13, %45 : vector<4x1024xf32>
    %47 = vector.broadcast %44 : vector<4x1xf32> to vector<4x1024xf32>
    %48 = arith.subf %13, %47 : vector<4x1024xf32>
    %49 = arith.mulf %46, %48 : vector<4x1024xf32>
    %cst_24 = arith.constant dense<0.000000e+00> : vector<4xf32>
    %50 = vector.multi_reduction <add>, %49, %cst_24 [1] : vector<4x1024xf32> to vector<4xf32>
    %51 = vector.shape_cast %50 : vector<4xf32> to vector<4x1xf32>
    %cst_25 = arith.constant 1.024000e+03 : f32
    %52 = vector.broadcast %cst_25 : f32 to vector<4x1xf32>
    %53 = arith.divf %51, %52 : vector<4x1xf32>
    %54 = vector.broadcast %44 : vector<4x1xf32> to vector<4x1024xf32>
    %55 = arith.subf %13, %54 : vector<4x1024xf32>
    %cst_26 = arith.constant 9.99999974E-6 : f32
    %56 = vector.broadcast %cst_26 : f32 to vector<4x1xf32>
    %57 = arith.addf %53, %56 : vector<4x1xf32>
    %58 = math.rsqrt %57 : vector<4x1xf32>
    %59 = vector.broadcast %58 : vector<4x1xf32> to vector<4x1024xf32>
    %60 = arith.mulf %55, %59 : vector<4x1024xf32>
    %61 = vector.broadcast %14 : vector<1x1024xf32> to vector<4x1024xf32>
    %62 = arith.mulf %60, %61 : vector<4x1024xf32>
    %63 = vector.broadcast %15 : vector<1x1024xf32> to vector<4x1024xf32>
    %64 = arith.addf %62, %63 : vector<4x1024xf32>
    %c0_27 = arith.constant 0 : index
    %c1 = arith.constant 1 : index
    %c0_28 = arith.constant 0 : index
    %65 = vector.load %arg8[%c0_27, %c1, %c0_28] : memref<1x5x1024xf32, #tpu.memory_space<vmem>>, vector<1x4x1024xf32>
    %66 = vector.shape_cast %65 : vector<1x4x1024xf32> to vector<4x1024xf32>
    %67 = vector.shape_cast %64 : vector<4x1024xf32> to vector<1x4x1024xf32>
    tpu.vector_store %arg8[%c0_27, %c1, %c0_28], %67 {strides = array<i32>} : memref<1x5x1024xf32, #tpu.memory_space<vmem>>, vector<1x4x1024xf32>,
    return
  }
  func.func @transform_0(%arg0: i32) -> (i32, i32, i32) {
    %c0_i32 = arith.constant 0 : i32
    %c0_i32_0 = arith.constant 0 : i32
    %c0_i32_1 = arith.constant 0 : i32
    return %arg0, %c0_i32, %c0_i32_0 : i32, i32, i32
  }
  func.func @transform_1(%arg0: i32) -> (i32, i32) {
    %c0_i32 = arith.constant 0 : i32
    %c0_i32_0 = arith.constant 0 : i32
    %c0_i32_1 = arith.constant 0 : i32
    return %c0_i32, %c0_i32_0 : i32, i32
  }
  func.func @transform_2(%arg0: i32) -> (i32, i32) {
    %c0_i32 = arith.constant 0 : i32
    %c0_i32_0 = arith.constant 0 : i32
    %c0_i32_1 = arith.constant 0 : i32
    return %c0_i32, %c0_i32_0 : i32, i32
  }
  func.func @transform_3(%arg0: i32) -> (i32, i32) {
    %c0_i32 = arith.constant 0 : i32
    %c0_i32_0 = arith.constant 0 : i32
    %c0_i32_1 = arith.constant 0 : i32
    return %c0_i32, %c0_i32_0 : i32, i32
  }
  func.func @transform_4(%arg0: i32) -> (i32, i32) {
    %c0_i32 = arith.constant 0 : i32
    %c0_i32_0 = arith.constant 0 : i32
    %c0_i32_1 = arith.constant 0 : i32
    return %c0_i32, %c0_i32_0 : i32, i32
  }
  func.func @transform_5(%arg0: i32) -> (i32, i32) {
    %c0_i32 = arith.constant 0 : i32
    %c0_i32_0 = arith.constant 0 : i32
    %c0_i32_1 = arith.constant 0 : i32
    return %c0_i32, %c0_i32_0 : i32, i32
  }
  func.func @transform_6(%arg0: i32) -> (i32, i32) {
    %c0_i32 = arith.constant 0 : i32
    %c0_i32_0 = arith.constant 0 : i32
    %c0_i32_1 = arith.constant 0 : i32
    return %c0_i32, %c0_i32_0 : i32, i32
  }
  func.func @transform_7(%arg0: i32) -> (i32, i32, i32) {
    %c0_i32 = arith.constant 0 : i32
    %c0_i32_0 = arith.constant 0 : i32
    %c0_i32_1 = arith.constant 0 : i32
    return %arg0, %c0_i32, %c0_i32_0 : i32, i32, i32
  }
}

</mosaic_0001>

<llo_original>
// kernel: tpu_custom_call.1
$region0: #{tpu_custom_call.1}
  #allocation0 [shape = 'u32[]', space=smem, size = 0x4, offset = 0x4, fixed_abs, tag = 'smem constant byte address 0x4 - core index']
  #allocation1 [shape = 'u32[144,128]{1,0:T(1,128)}', space=vmem, size = 0x12000, scoped, tag = 'internal scratch']
  %s0 = inlined_call_operand.hbm [shape: f32[2,4,192], index: 0, kind: input, shape index: {}]
  %s1 = inlined_call_operand.hbm [shape: bf16[192,1024], index: 1, kind: input, shape index: {}]
  %s2 = inlined_call_operand.hbm [shape: f32[1,1024], index: 2, kind: input, shape index: {}]
  %s3 = inlined_call_operand.hbm [shape: f32[1,1024], index: 3, kind: input, shape index: {}]
  %s4 = inlined_call_operand.hbm [shape: f32[5,1024], index: 4, kind: input, shape index: {}]
  %s5 = inlined_call_operand.vmem [shape: f32[1,1024], index: 5, kind: input, shape index: {}]
  %s6 = inlined_call_operand.hbm [shape: f32[1,1024], index: 6, kind: input, shape index: {}]
  %s7 = inlined_call_operand.vmem [shape: f32[2,5,1024], index: 7, kind: output, shape index: {}]
  %s8 = sld [smem:[#allocation0]]
  $region85: #{tpu_custom_call.1} parent=0
    _
  %s10 = ssub.s32 1, %s8
  %s11 = scalar_select 0, %s10, %s8
  $region1: #{tpu_custom_call.1} parent=0
    #allocation2 [shape = 'u8[8192]{0}', space=vmem, size = 0x2000, scoped, tag = 'input window, operand 0']
    #allocation3 [shape = 's32[2]{0}', space=sflag, size = 0x8, scoped, tag = 'scoped memory for tpu_custom_call.1']
    #allocation4 [shape = 'u8[393216]{0}', space=vmem, size = 0x60000, scoped, tag = 'input window, operand 1, single buffered']
    #allocation5 [shape = 's32[1]{0}', space=sflag, size = 0x4, scoped, tag = 'scoped memory for tpu_custom_call.1']
    #allocation6 [shape = 'u8[4096]{0}', space=vmem, size = 0x1000, scoped, tag = 'input window, operand 2, single buffered']
    #allocation7 [shape = 'u8[4096]{0}', space=vmem, size = 0x1000, scoped, tag = 'input window, operand 3, single buffered']
    #allocation8 [shape = 's32[1]{0}', space=sflag, size = 0x4, scoped, tag = 'scoped memory for tpu_custom_call.1']
    #allocation9 [shape = 'u8[32768]{0}', space=vmem, size = 0x8000, scoped, tag = 'input window, operand 4, single buffered']
    #allocation10 [shape = 'u8[4096]{0}', space=vmem, size = 0x1000, scoped, tag = 'input window, operand 6, single buffered']
    #allocation11 [shape = 's32[1]{0}', space=sflag, size = 0x4, scoped, tag = 'scoped memory for tpu_custom_call.1']
    %12 = vsyncpa [#allocation3], 0
    %s13 = scalar_lea.sflag [#allocation3], 1
    %14 = vsyncpa %s13, 0
    %15 = vsyncpa [#allocation5], 0
    %16 = vsyncpa [#allocation8], 0
    %17 = vsyncpa [#allocation11], 0
    loop: start=0, step=1, limit=4
    $region2: #{tpu_custom_call.1} parent=1 // loop_pre_header
      _
    $region3: #{tpu_custom_call.1} parent=1 // loop_header
      %s19 = sphi 0, %s23
      %p20 = scmp.ge.s32.totalorder %s19, 4
      %s29 = sphi 0, %s31
      %s32 = sphi 0, %s29
      %s33 = sphi 0, %s32
      %s49 = sphi 0, %s33
      %s53 = sphi 0, %s53
      %s55 = sphi 0, %s53
      %s56 = sphi 0, %s55
      %s70 = sphi 0, %s56
      %s74 = sphi 0, %s74
      %s76 = sphi 0, %s74
      %s77 = sphi 0, %s76
      %s91 = sphi 0, %s77
      %s95 = sphi 0, %s95
      %s97 = sphi 0, %s95
      %s98 = sphi 0, %s97
      %s112 = sphi 0, %s98
      %s116 = sphi 0, %s116
      %s118 = sphi 0, %s116
      %s119 = sphi 0, %s118
      %s133 = sphi 0, %s119
      %s137 = sphi 0, %s137
      %s139 = sphi 0, %s137
      %s140 = sphi 0, %s139
      %s154 = sphi 0, %s140
      %s158 = sphi 0, %s158
      %s160 = sphi 0, %s158
      %s161 = sphi 0, %s160
      %s175 = sphi 0, %s161
      %s181 = sphi 0, %s183
      %s184 = sphi 0, %s181
      %s185 = sphi 0, %s184
      %s201 = sphi 0, %s185
    $region4: #{tpu_custom_call.1} parent=1 // loop_header_branch
      %22 = sbr.rel (%p20) target = $region8
    $region5: #{tpu_custom_call.1} parent=1 // loop_body
      %s24 = ssub.s32 %s19, 1
      %s25 = ssub.s32 %s19, 2
      %s26 = sadd.s32 %s19, 1
      %s27 = ssub.s32 %s19, %s26
      %p28 = scmp.eq.s32.totalorder %s27, 0
      %s30 = sadd.s32 %s29, 1
      %s31 = scalar_select %p28, %s29, %s30
      %p34 = pneg %p28
      %p35 = scmp.eq.s32.totalorder %s19, 1
      %p36 = por %p34, %p35
      %p37 = scmp.ne.s32.totalorder %s29, %s32
      %p38 = scmp.eq.s32.totalorder %s19, 0
      %p39 = por %p37, %p38
      %p40 = scmp.ne.s32.totalorder %s29, %s32
      %p41 = scmp.eq.s32.totalorder %s24, 1
      %p42 = por %p40, %p41
      %p43 = scmp.ne.s32.totalorder %s32, %s33
      %p44 = scmp.eq.s32.totalorder %s24, 0
      %p45 = por %p43, %p44
      %p46 = scmp.ne.s32.totalorder %s32, %s33
      %p47 = scmp.eq.s32.totalorder %s25, 1
      %p48 = por %p46, %p47
      %p50 = scmp.ne.s32.totalorder %s33, %s49
      %p51 = scmp.eq.s32.totalorder %s25, 0
      %p52 = por %p50, %p51
      %s54 = sadd.s32 %s53, 1
      %p57 = scmp.eq.s32.totalorder %s19, 1
      %p58 = scmp.ne.s32.totalorder %s53, %s55
      %p59 = scmp.eq.s32.totalorder %s19, 0
      %p60 = por %p58, %p59
      %p61 = scmp.ne.s32.totalorder %s53, %s55
      %p62 = scmp.eq.s32.totalorder %s24, 1
      %p63 = por %p61, %p62
      %p64 = scmp.ne.s32.totalorder %s55, %s56
      %p65 = scmp.eq.s32.totalorder %s24, 0
      %p66 = por %p64, %p65
      %p67 = scmp.ne.s32.totalorder %s55, %s56
      %p68 = scmp.eq.s32.totalorder %s25, 1
      %p69 = por %p67, %p68
      %p71 = scmp.ne.s32.totalorder %s56, %s70
      %p72 = scmp.eq.s32.totalorder %s25, 0
      %p73 = por %p71, %p72
      %s75 = sadd.s32 %s74, 1
      %p78 = scmp.eq.s32.totalorder %s19, 1
      %p79 = scmp.ne.s32.totalorder %s74, %s76
      %p80 = scmp.eq.s32.totalorder %s19, 0
      %p81 = por %p79, %p80
      %p82 = scmp.ne.s32.totalorder %s74, %s76
      %p83 = scmp.eq.s32.totalorder %s24, 1
      %p84 = por %p82, %p83
      %p85 = scmp.ne.s32.totalorder %s76, %s77
      %p86 = scmp.eq.s32.totalorder %s24, 0
      %p87 = por %p85, %p86
      %p88 = scmp.ne.s32.totalorder %s76, %s77
      %p89 = scmp.eq.s32.totalorder %s25, 1
      %p90 = por %p88, %p89
      %p92 = scmp.ne.s32.totalorder %s77, %s91
      %p93 = scmp.eq.s32.totalorder %s25, 0
      %p94 = por %p92, %p93
      %s96 = sadd.s32 %s95, 1
      %p99 = scmp.eq.s32.totalorder %s19, 1
      %p100 = scmp.ne.s32.totalorder %s95, %s97
      %p101 = scmp.eq.s32.totalorder %s19, 0
      %p102 = por %p100, %p101
      %p103 = scmp.ne.s32.totalorder %s95, %s97
      %p104 = scmp.eq.s32.totalorder %s24, 1
      %p105 = por %p103, %p104
      %p106 = scmp.ne.s32.totalorder %s97, %s98
      %p107 = scmp.eq.s32.totalorder %s24, 0
      %p108 = por %p106, %p107
      %p109 = scmp.ne.s32.totalorder %s97, %s98
      %p110 = scmp.eq.s32.totalorder %s25, 1
      %p111 = por %p109, %p110
      %p113 = scmp.ne.s32.totalorder %s98, %s112
      %p114 = scmp.eq.s32.totalorder %s25, 0
      %p115 = por %p113, %p114
      %s117 = sadd.s32 %s116, 1
      %p120 = scmp.eq.s32.totalorder %s19, 1
      %p121 = scmp.ne.s32.totalorder %s116, %s118
      %p122 = scmp.eq.s32.totalorder %s19, 0
      %p123 = por %p121, %p122
      %p124 = scmp.ne.s32.totalorder %s116, %s118
      %p125 = scmp.eq.s32.totalorder %s24, 1
      %p126 = por %p124, %p125
      %p127 = scmp.ne.s32.totalorder %s118, %s119
      %p128 = scmp.eq.s32.totalorder %s24, 0
      %p129 = por %p127, %p128
      %p130 = scmp.ne.s32.totalorder %s118, %s119
      %p131 = scmp.eq.s32.totalorder %s25, 1
      %p132 = por %p130, %p131
      %p134 = scmp.ne.s32.totalorder %s119, %s133
      %p135 = scmp.eq.s32.totalorder %s25, 0
      %p136 = por %p134, %p135
      %s138 = sadd.s32 %s137, 1
      %p141 = scmp.eq.s32.totalorder %s19, 1
      %p142 = scmp.ne.s32.totalorder %s137, %s139
      %p143 = scmp.eq.s32.totalorder %s19, 0
      %p144 = por %p142, %p143
      %p145 = scmp.ne.s32.totalorder %s137, %s139
      %p146 = scmp.eq.s32.totalorder %s24, 1
      %p147 = por %p145, %p146
      %p148 = scmp.ne.s32.totalorder %s139, %s140
      %p149 = scmp.eq.s32.totalorder %s24, 0
      %p150 = por %p148, %p149
      %p151 = scmp.ne.s32.totalorder %s139, %s140
      %p152 = scmp.eq.s32.totalorder %s25, 1
      %p153 = por %p151, %p152
      %p155 = scmp.ne.s32.totalorder %s140, %s154
      %p156 = scmp.eq.s32.totalorder %s25, 0
      %p157 = por %p155, %p156
      %s159 = sadd.s32 %s158, 1
      %p162 = scmp.eq.s32.totalorder %s19, 1
      %p163 = scmp.ne.s32.totalorder %s158, %s160
      %p164 = scmp.eq.s32.totalorder %s19, 0
      %p165 = por %p163, %p164
      %p166 = scmp.ne.s32.totalorder %s158, %s160
      %p167 = scmp.eq.s32.totalorder %s24, 1
      %p168 = por %p166, %p167
      %p169 = scmp.ne.s32.totalorder %s160, %s161
      %p170 = scmp.eq.s32.totalorder %s24, 0
      %p171 = por %p169, %p170
      %p172 = scmp.ne.s32.totalorder %s160, %s161
      %p173 = scmp.eq.s32.totalorder %s25, 1
      %p174 = por %p172, %p173
      %p176 = scmp.ne.s32.totalorder %s161, %s175
      %p177 = scmp.eq.s32.totalorder %s25, 0
      %p178 = por %p176, %p177
      %s179 = ssub.s32 %s19, %s26
      %p180 = scmp.eq.s32.totalorder %s179, 0
      %s182 = sadd.s32 %s181, 1
      %s183 = scalar_select %p180, %s181, %s182
      %p186 = pneg %p180
      %p187 = scmp.eq.s32.totalorder %s19, 1
      %p188 = por %p186, %p187
      %p189 = scmp.ne.s32.totalorder %s181, %s184
      %p190 = scmp.eq.s32.totalorder %s19, 0
      %p191 = por %p189, %p190
      %p192 = scmp.ne.s32.totalorder %s181, %s184
      %p193 = scmp.eq.s32.totalorder %s24, 1
      %p194 = por %p192, %p193
      %p195 = scmp.ne.s32.totalorder %s184, %s185
      %p196 = scmp.eq.s32.totalorder %s24, 0
      %p197 = por %p195, %p196
      %p198 = scmp.ne.s32.totalorder %s184, %s185
      %p199 = scmp.eq.s32.totalorder %s25, 1
      %p200 = por %p198, %p199
      %p202 = scmp.ne.s32.totalorder %s185, %s201
      %p203 = scmp.eq.s32.totalorder %s25, 0
      %p204 = por %p202, %p203
      %p205 = scmp.le.s32.totalorder 1, %s19
      %p206 = scmp.lt.s32.totalorder %s19, 3
      %p207 = pnand %p205, %p206
      %p208 = pneg %p207
      // Predicated region
      $region9: #{tpu_custom_call.1} parent=5 // pred_check
        _
      $region10: #{tpu_custom_call.1} parent=5 // pred_check_branch
        %210 = sbr.rel (%p207) target = $region12
      $region11: #{tpu_custom_call.1} parent=5 // pred_region
        %s211 = ssub.s32 %s19, 1
        // Predicated region
        $region13: #{tpu_custom_call.1} parent=11 // pred_check
          %p212 = pneg %p66
        $region14: #{tpu_custom_call.1} parent=11 // pred_check_branch
          %214 = sbr.rel (%p212) target = $region16
        $region15: #{tpu_custom_call.1} parent=11 // pred_region
          %s216 = ssub.s32 12288, 12288
          %217 = vsyncadd [#allocation5], %s216
          %s218 = sshll.u32 [#allocation4], 4
          %s219 = int_to_ptr.vmem [resolvable:$true] %s218
          %224 = dma.hbm_to_vmem [thread:$0]  %s1, 12288, %s219, [#allocation5], 512, 512, 32
        $region16: #{tpu_custom_call.1} parent=11 // pred_fallthru
          _
        // Predicated region
        $region17: #{tpu_custom_call.1} parent=11 // pred_check
          %p225 = pneg %p87
        $region18: #{tpu_custom_call.1} parent=11 // pred_check_branch
          %227 = sbr.rel (%p225) target = $region20
        $region19: #{tpu_custom_call.1} parent=11 // pred_region
          %s229 = ssub.s32 128, 128
          %230 = vsyncadd [#allocation5], %s229
          %s232 = sshll.u32 [#allocation6], 4
          %s233 = int_to_ptr.vmem [resolvable:$true] %s232
          %235 = dma.hbm_to_vmem [thread:$0]  %s2, 128, %s233, [#allocation5]
        $region20: #{tpu_custom_call.1} parent=11 // pred_fallthru
          _
        // Predicated region
        $region21: #{tpu_custom_call.1} parent=11 // pred_check
          %p236 = pneg %p108
        $region22: #{tpu_custom_call.1} parent=11 // pred_check_branch
          %238 = sbr.rel (%p236) target = $region24
        $region23: #{tpu_custom_call.1} parent=11 // pred_region
          %s240 = ssub.s32 128, 128
          %241 = vsyncadd [#allocation8], %s240
          %s243 = sshll.u32 [#allocation7], 4
          %s244 = int_to_ptr.vmem [resolvable:$true] %s243
          %246 = dma.hbm_to_vmem [thread:$0]  %s3, 128, %s244, [#allocation8]
        $region24: #{tpu_custom_call.1} parent=11 // pred_fallthru
          _
        // Predicated region
        $region25: #{tpu_custom_call.1} parent=11 // pred_check
          %p247 = pneg %p129
        $region26: #{tpu_custom_call.1} parent=11 // pred_check_branch
          %249 = sbr.rel (%p247) target = $region28
        $region27: #{tpu_custom_call.1} parent=11 // pred_region
          %s251 = ssub.s32 1024, 1024
          %252 = vsyncadd [#allocation8], %s251
          %s254 = sshll.u32 [#allocation9], 4
          %s255 = int_to_ptr.vmem [resolvable:$true] %s254
          %257 = dma.hbm_to_vmem [thread:$0]  %s4, 1024, %s255, [#allocation8]
        $region28: #{tpu_custom_call.1} parent=11 // pred_fallthru
          _
        // Predicated region
        $region29: #{tpu_custom_call.1} parent=11 // pred_check
          %p258 = pneg %p150
        $region30: #{tpu_custom_call.1} parent=11 // pred_check_branch
          %260 = sbr.rel (%p258) target = $region32
        $region31: #{tpu_custom_call.1} parent=11 // pred_region
          _
        $region32: #{tpu_custom_call.1} parent=11 // pred_fallthru
          _
        // Predicated region
        $region33: #{tpu_custom_call.1} parent=11 // pred_check
          %p261 = pneg %p171
        $region34: #{tpu_custom_call.1} parent=11 // pred_check_branch
          %263 = sbr.rel (%p261) target = $region36
        $region35: #{tpu_custom_call.1} parent=11 // pred_region
          %s265 = ssub.s32 128, 128
          %266 = vsyncadd [#allocation11], %s265
          %s268 = sshll.u32 [#allocation10], 4
          %s269 = int_to_ptr.vmem [resolvable:$true] %s268
          %271 = dma.hbm_to_vmem [thread:$0]  %s6, 128, %s269, [#allocation11]
        $region36: #{tpu_custom_call.1} parent=11 // pred_fallthru
          _
      $region12: #{tpu_custom_call.1} parent=5 // pred_fallthru
        _
      %p272 = scmp.lt.s32.totalorder %s19, 2
      // Predicated region
      $region37: #{tpu_custom_call.1} parent=5 // pred_check
        %p273 = pneg %p272
      $region38: #{tpu_custom_call.1} parent=5 // pred_check_branch
        %275 = sbr.rel (%p273) target = $region40
      $region39: #{tpu_custom_call.1} parent=5 // pred_region
        // Predicated region
        $region41: #{tpu_custom_call.1} parent=39 // pred_check
          %p276 = pneg %p39
        $region42: #{tpu_custom_call.1} parent=39 // pred_check_branch
          %278 = sbr.rel (%p276) target = $region44
        $region43: #{tpu_custom_call.1} parent=39 // pred_region
          %s279 = sand.u32 %s29, 1
          %s280 = scalar_lea.sflag [#allocation3], %s279
          %s281 = sand.u32 %s29, 1
          %s282 = smul.addr %s281, 8
          %s283 = scalar_lea.vmem [#allocation2], %s282
          %s285 = ssub.s32 128, 128
          %286 = vsyncadd %s280, %s285
          %s287 = smul.addr %s19, 2
          %s288 = smul.addr %s287, 64
          %s289 = scalar_lea.hbm %s0, %s288
          %s291 = sshll.u32 %s283, 4
          %s292 = int_to_ptr.vmem [resolvable:$true] %s291
          %294 = dma.hbm_to_vmem [thread:$0]  %s289, 128, %s292, %s280
        $region44: #{tpu_custom_call.1} parent=39 // pred_fallthru
          _
      $region40: #{tpu_custom_call.1} parent=5 // pred_fallthru
        _
      %p295 = scmp.le.s32.totalorder 1, %s19
      %p296 = scmp.lt.s32.totalorder %s19, 3
      %p297 = pnand %p295, %p296
      %p298 = pneg %p297
      // Predicated region
      $region45: #{tpu_custom_call.1} parent=5 // pred_check
        _
      $region46: #{tpu_custom_call.1} parent=5 // pred_check_branch
        %300 = sbr.rel (%p297) target = $region48
      $region47: #{tpu_custom_call.1} parent=5 // pred_region
        %s301 = ssub.s32 %s19, 1
        %s302 = sand.u32 %s32, 1
        %s303 = scalar_lea.sflag [#allocation3], %s302
        %s304 = sand.u32 %s32, 1
        %s305 = smul.addr %s304, 8
        %s306 = scalar_lea.vmem [#allocation2], %s305
        // Predicated region
        $region49: #{tpu_custom_call.1} parent=47 // pred_check
          %p307 = pneg %p45
        $region50: #{tpu_custom_call.1} parent=47 // pred_check_branch
          %309 = sbr.rel (%p307) target = $region52
        $region51: #{tpu_custom_call.1} parent=47 // pred_region
          %310 = dma.done %s303, 128
        $region52: #{tpu_custom_call.1} parent=47 // pred_fallthru
          _
        // Predicated region
        $region53: #{tpu_custom_call.1} parent=47 // pred_check
          %p311 = pneg %p66
        $region54: #{tpu_custom_call.1} parent=47 // pred_check_branch
          %313 = sbr.rel (%p311) target = $region56
        $region55: #{tpu_custom_call.1} parent=47 // pred_region
          %314 = dma.done [#allocation5], 12288
        $region56: #{tpu_custom_call.1} parent=47 // pred_fallthru
          _
        // Predicated region
        $region57: #{tpu_custom_call.1} parent=47 // pred_check
          %p315 = pneg %p87
        $region58: #{tpu_custom_call.1} parent=47 // pred_check_branch
          %317 = sbr.rel (%p315) target = $region60
        $region59: #{tpu_custom_call.1} parent=47 // pred_region
          %318 = dma.done [#allocation5], 128
        $region60: #{tpu_custom_call.1} parent=47 // pred_fallthru
          _
        // Predicated region
        $region61: #{tpu_custom_call.1} parent=47 // pred_check
          %p319 = pneg %p108
        $region62: #{tpu_custom_call.1} parent=47 // pred_check_branch
          %321 = sbr.rel (%p319) target = $region64
        $region63: #{tpu_custom_call.1} parent=47 // pred_region
          %322 = dma.done [#allocation8], 128
        $region64: #{tpu_custom_call.1} parent=47 // pred_fallthru
          _
        // Predicated region
        $region65: #{tpu_custom_call.1} parent=47 // pred_check
          %p323 = pneg %p129
        $region66: #{tpu_custom_call.1} parent=47 // pred_check_branch
          %325 = sbr.rel (%p323) target = $region68
        $region67: #{tpu_custom_call.1} parent=47 // pred_region
          %326 = dma.done [#allocation8], 1024
        $region68: #{tpu_custom_call.1} parent=47 // pred_fallthru
          _
        // Predicated region
        $region69: #{tpu_custom_call.1} parent=47 // pred_check
          %p327 = pneg %p171
        $region70: #{tpu_custom_call.1} parent=47 // pred_check_branch
          %329 = sbr.rel (%p327) target = $region72
        $region71: #{tpu_custom_call.1} parent=47 // pred_region
          %330 = dma.done [#allocation11], 128
        $region72: #{tpu_custom_call.1} parent=47 // pred_fallthru
          _
        %s331 = sand.u32 %s32, 1
        %s332 = scalar_lea.sflag [#allocation3], %s331
        %s333 = sand.u32 %s32, 1
        %s334 = smul.addr %s333, 8
        %s335 = scalar_lea.vmem [#allocation2], %s334
        %p336 = pneg %p45
        %p337 = pneg %p42
        %p338 = pneg %p66
        %p339 = pneg %p63
        %p340 = pneg %p87
        %p341 = pneg %p84
        %p342 = pneg %p108
        %p343 = pneg %p105
        %p344 = pneg %p129
        %p345 = pneg %p126
        %p346 = pneg %p150
        %p347 = pneg %p147
        %p348 = pneg %p171
        %p349 = pneg %p168
        %p350 = pneg %p197
        %p351 = pneg %p194
        %p352 = scmp.lt.s32.totalorder %s24, 1
        %s353 = scalar_select %p352, %s24, 1
        %s354 = smul.addr %s353, 8
        %s355 = smul.addr %s354, 8
        %s356 = scalar_lea.vmem %s7, %s355
        %p357 = scmp.lt.s32.totalorder %s24, 1
        %s358 = scalar_select %p357, %s24, 1
        %s359 = smul.addr %s358, 8
        %s360 = smul.addr %s359, 8
        %s361 = scalar_lea.vmem %s7, %s360
        %v363 = vld [vmem:[%s306] sm:$0xff]
        %v365 = vcombine.high %v363, %v363
        %v367 = vpack.c.bf16 %v363, %v363
        %v368 = vpack.c.bf16 %v365, %v365
        %v369 = vld [vmem:[#allocation4] sm:$0xff]
        %v370 = vld [vmem:[#allocation4 + $0x8] sm:$0xff]
        %v371 = vld [vmem:[#allocation4 + $0x10] sm:$0xff]
        %v372 = vld [vmem:[#allocation4 + $0x18] sm:$0xff]
        %v373 = vld [vmem:[#allocation4 + $0x20] sm:$0xff]
        %v374 = vld [vmem:[#allocation4 + $0x28] sm:$0xff]
        %v375 = vld [vmem:[#allocation4 + $0x30] sm:$0xff]
        %v376 = vld [vmem:[#allocation4 + $0x38] sm:$0xff]
        %v377 = vld [vmem:[#allocation4 + $0x40] sm:$0xff]
        %v378 = vld [vmem:[#allocation4 + $0x48] sm:$0xff]
        %v379 = vld [vmem:[#allocation4 + $0x50] sm:$0xff]
        %v380 = vld [vmem:[#allocation4 + $0x58] sm:$0xff]
        %v381 = vld [vmem:[#allocation4 + $0x60] sm:$0xff]
        %v382 = vld [vmem:[#allocation4 + $0x68] sm:$0xff]
        %v383 = vld [vmem:[#allocation4 + $0x70] sm:$0xff]
        %v384 = vld [vmem:[#allocation4 + $0x78] sm:$0xff]
        %v385 = vld [vmem:[#allocation4 + $0x80] sm:$0xff]
        %v386 = vld [vmem:[#allocation4 + $0x88] sm:$0xff]
        %v387 = vld [vmem:[#allocation4 + $0x90] sm:$0xff]
        %v388 = vld [vmem:[#allocation4 + $0x98] sm:$0xff]
        %v389 = vld [vmem:[#allocation4 + $0xa0] sm:$0xff]
        %v390 = vld [vmem:[#allocation4 + $0xa8] sm:$0xff]
        %v391 = vld [vmem:[#allocation4 + $0xb0] sm:$0xff]
        %v392 = vld [vmem:[#allocation4 + $0xb8] sm:$0xff]
        %v393 = vld [vmem:[#allocation4 + $0xc0] sm:$0xff]
        %v394 = vld [vmem:[#allocation4 + $0xc8] sm:$0xff]
        %v395 = vld [vmem:[#allocation4 + $0xd0] sm:$0xff]
        %v396 = vld [vmem:[#allocation4 + $0xd8] sm:$0xff]
        %v397 = vld [vmem:[#allocation4 + $0xe0] sm:$0xff]
        %v398 = vld [vmem:[#allocation4 + $0xe8] sm:$0xff]
        %v399 = vld [vmem:[#allocation4 + $0xf0] sm:$0xff]
        %v400 = vld [vmem:[#allocation4 + $0xf8] sm:$0xff]
        %v401 = vld [vmem:[#allocation4 + $0x100] sm:$0xff]
        %v402 = vld [vmem:[#allocation4 + $0x108] sm:$0xff]
        %v403 = vld [vmem:[#allocation4 + $0x110] sm:$0xff]
        %v404 = vld [vmem:[#allocation4 + $0x118] sm:$0xff]
        %v405 = vld [vmem:[#allocation4 + $0x120] sm:$0xff]
        %v406 = vld [vmem:[#allocation4 + $0x128] sm:$0xff]
        %v407 = vld [vmem:[#allocation4 + $0x130] sm:$0xff]
        %v408 = vld [vmem:[#allocation4 + $0x138] sm:$0xff]
        %v409 = vld [vmem:[#allocation4 + $0x140] sm:$0xff]
        %v410 = vld [vmem:[#allocation4 + $0x148] sm:$0xff]
        %v411 = vld [vmem:[#allocation4 + $0x150] sm:$0xff]
        %v412 = vld [vmem:[#allocation4 + $0x158] sm:$0xff]
        %v413 = vld [vmem:[#allocation4 + $0x160] sm:$0xff]
        %v414 = vld [vmem:[#allocation4 + $0x168] sm:$0xff]
        %v415 = vld [vmem:[#allocation4 + $0x170] sm:$0xff]
        %v416 = vld [vmem:[#allocation4 + $0x178] sm:$0xff]
        %v417 = vld [vmem:[#allocation4 + $0x180] sm:$0xff]
        %v418 = vld [vmem:[#allocation4 + $0x188] sm:$0xff]
        %v419 = vld [vmem:[#allocation4 + $0x190] sm:$0xff]
        %v420 = vld [vmem:[#allocation4 + $0x198] sm:$0xff]
        %v421 = vld [vmem:[#allocation4 + $0x1a0] sm:$0xff]
        %v422 = vld [vmem:[#allocation4 + $0x1a8] sm:$0xff]
        %v423 = vld [vmem:[#allocation4 + $0x1b0] sm:$0xff]
        %v424 = vld [vmem:[#allocation4 + $0x1b8] sm:$0xff]
        %v425 = vld [vmem:[#allocation4 + $0x1c0] sm:$0xff]
        %v426 = vld [vmem:[#allocation4 + $0x1c8] sm:$0xff]
        %v427 = vld [vmem:[#allocation4 + $0x1d0] sm:$0xff]
        %v428 = vld [vmem:[#allocation4 + $0x1d8] sm:$0xff]
        %v429 = vld [vmem:[#allocation4 + $0x1e0] sm:$0xff]
        %v430 = vld [vmem:[#allocation4 + $0x1e8] sm:$0xff]
        %v431 = vld [vmem:[#allocation4 + $0x1f0] sm:$0xff]
        %v432 = vld [vmem:[#allocation4 + $0x1f8] sm:$0xff]
        %v433 = vld [vmem:[#allocation4 + $0x200] sm:$0xff]
        %v434 = vld [vmem:[#allocation4 + $0x208] sm:$0xff]
        %v435 = vld [vmem:[#allocation4 + $0x210] sm:$0xff]
        %v436 = vld [vmem:[#allocation4 + $0x218] sm:$0xff]
        %v437 = vld [vmem:[#allocation4 + $0x220] sm:$0xff]
        %v438 = vld [vmem:[#allocation4 + $0x228] sm:$0xff]
        %v439 = vld [vmem:[#allocation4 + $0x230] sm:$0xff]
        %v440 = vld [vmem:[#allocation4 + $0x238] sm:$0xff]
        %v441 = vld [vmem:[#allocation4 + $0x240] sm:$0xff]
        %v442 = vld [vmem:[#allocation4 + $0x248] sm:$0xff]
        %v443 = vld [vmem:[#allocation4 + $0x250] sm:$0xff]
        %v444 = vld [vmem:[#allocation4 + $0x258] sm:$0xff]
        %v445 = vld [vmem:[#allocation4 + $0x260] sm:$0xff]
        %v446 = vld [vmem:[#allocation4 + $0x268] sm:$0xff]
        %v447 = vld [vmem:[#allocation4 + $0x270] sm:$0xff]
        %v448 = vld [vmem:[#allocation4 + $0x278] sm:$0xff]
        %v449 = vld [vmem:[#allocation4 + $0x280] sm:$0xff]
        %v450 = vld [vmem:[#allocation4 + $0x288] sm:$0xff]
        %v451 = vld [vmem:[#allocation4 + $0x290] sm:$0xff]
        %v452 = vld [vmem:[#allocation4 + $0x298] sm:$0xff]
        %v453 = vld [vmem:[#allocation4 + $0x2a0] sm:$0xff]
        %v454 = vld [vmem:[#allocation4 + $0x2a8] sm:$0xff]
        %v455 = vld [vmem:[#allocation4 + $0x2b0] sm:$0xff]
        %v456 = vld [vmem:[#allocation4 + $0x2b8] sm:$0xff]
        %v457 = vld [vmem:[#allocation4 + $0x2c0] sm:$0xff]
        %v458 = vld [vmem:[#allocation4 + $0x2c8] sm:$0xff]
        %v459 = vld [vmem:[#allocation4 + $0x2d0] sm:$0xff]
        %v460 = vld [vmem:[#allocation4 + $0x2d8] sm:$0xff]
        %v461 = vld [vmem:[#allocation4 + $0x2e0] sm:$0xff]
        %v462 = vld [vmem:[#allocation4 + $0x2e8] sm:$0xff]
        %v463 = vld [vmem:[#allocation4 + $0x2f0] sm:$0xff]
        %v464 = vld [vmem:[#allocation4 + $0x2f8] sm:$0xff]
        %v465 = vld [vmem:[#allocation6] sm:$0xff]
        %v467 = vlaneseq
        %v468 = vshrl.u32 %v467, 7
        %v469 = vsub.s32 0, %v468
        %v470 = vrot.slane %v465, %v469
        %v471 = vlaneseq
        %v472 = vshrl.u32 %v471, 7
        %v473 = vsub.s32 1, %v472
        %v474 = vrot.slane %v465, %v473
        %v475 = vlaneseq
        %v476 = vshrl.u32 %v475, 7
        %v477 = vsub.s32 2, %v476
        %v478 = vrot.slane %v465, %v477
        %v479 = vlaneseq
        %v480 = vshrl.u32 %v479, 7
        %v481 = vsub.s32 3, %v480
        %v482 = vrot.slane %v465, %v481
        %v483 = vlaneseq
        %v484 = vshrl.u32 %v483, 7
        %v485 = vsub.s32 4, %v484
        %v486 = vrot.slane %v465, %v485
        %v487 = vlaneseq
        %v488 = vshrl.u32 %v487, 7
        %v489 = vsub.s32 5, %v488
        %v490 = vrot.slane %v465, %v489
        %v491 = vlaneseq
        %v492 = vshrl.u32 %v491, 7
        %v493 = vsub.s32 6, %v492
        %v494 = vrot.slane %v465, %v493
        %v495 = vlaneseq
        %v496 = vshrl.u32 %v495, 7
        %v497 = vsub.s32 7, %v496
        %v498 = vrot.slane %v465, %v497
        %v603 = vunpack.c.l.b16 %v369
        %v604 = vunpack.c.h.b16 %v369
        %v605 = vunpack.c.l.b16 %v370
        %v606 = vunpack.c.h.b16 %v370
        %v607 = vunpack.c.l.b16 %v371
        %v608 = vunpack.c.h.b16 %v371
        %v609 = vunpack.c.l.b16 %v372
        %v610 = vunpack.c.h.b16 %v372
        %v611 = vunpack.c.l.b16 %v373
        %v612 = vunpack.c.h.b16 %v373
        %v613 = vunpack.c.l.b16 %v374
        %v614 = vunpack.c.h.b16 %v374
        %v615 = vunpack.c.l.b16 %v375
        %v616 = vunpack.c.h.b16 %v375
        %v617 = vunpack.c.l.b16 %v376
        %v618 = vunpack.c.h.b16 %v376
        %v619 = vunpack.c.l.b16 %v377
        %v620 = vunpack.c.h.b16 %v377
        %v621 = vunpack.c.l.b16 %v378
        %v622 = vunpack.c.h.b16 %v378
        %v623 = vunpack.c.l.b16 %v379
        %v624 = vunpack.c.h.b16 %v379
        %v625 = vunpack.c.l.b16 %v380
        %v626 = vunpack.c.h.b16 %v380
        %v627 = vunpack.c.l.b16 %v381
        %v628 = vunpack.c.h.b16 %v381
        %v629 = vunpack.c.l.b16 %v382
        %v630 = vunpack.c.h.b16 %v382
        %v631 = vunpack.c.l.b16 %v383
        %v632 = vunpack.c.h.b16 %v383
        %v633 = vunpack.c.l.b16 %v384
        %v634 = vunpack.c.h.b16 %v384
        %v635 = vunpack.c.l.b16 %v385
        %v636 = vunpack.c.h.b16 %v385
        %v637 = vunpack.c.l.b16 %v386
        %v638 = vunpack.c.h.b16 %v386
        %v639 = vunpack.c.l.b16 %v387
        %v640 = vunpack.c.h.b16 %v387
        %v641 = vunpack.c.l.b16 %v388
        %v642 = vunpack.c.h.b16 %v388
        %v643 = vunpack.c.l.b16 %v389
        %v644 = vunpack.c.h.b16 %v389
        %v645 = vunpack.c.l.b16 %v390
        %v646 = vunpack.c.h.b16 %v390
        %v647 = vunpack.c.l.b16 %v391
        %v648 = vunpack.c.h.b16 %v391
        %v649 = vunpack.c.l.b16 %v392
        %v650 = vunpack.c.h.b16 %v392
        %v651 = vunpack.c.l.b16 %v393
        %v652 = vunpack.c.h.b16 %v393
        %v653 = vunpack.c.l.b16 %v394
        %v654 = vunpack.c.h.b16 %v394
        %v655 = vunpack.c.l.b16 %v395
        %v656 = vunpack.c.h.b16 %v395
        %v657 = vunpack.c.l.b16 %v396
        %v658 = vunpack.c.h.b16 %v396
        %v659 = vunpack.c.l.b16 %v397
        %v660 = vunpack.c.h.b16 %v397
        %v661 = vunpack.c.l.b16 %v398
        %v662 = vunpack.c.h.b16 %v398
        %v663 = vunpack.c.l.b16 %v399
        %v664 = vunpack.c.h.b16 %v399
        %v665 = vunpack.c.l.b16 %v400
        %v666 = vunpack.c.h.b16 %v400
        %v667 = vunpack.c.l.b16 %v401
        %v668 = vunpack.c.h.b16 %v401
        %v669 = vunpack.c.l.b16 %v402
        %v670 = vunpack.c.h.b16 %v402
        %v671 = vunpack.c.l.b16 %v403
        %v672 = vunpack.c.h.b16 %v403
        %v673 = vunpack.c.l.b16 %v404
        %v674 = vunpack.c.h.b16 %v404
        %v675 = vunpack.c.l.b16 %v405
        %v676 = vunpack.c.h.b16 %v405
        %v677 = vunpack.c.l.b16 %v406
        %v678 = vunpack.c.h.b16 %v406
        %v679 = vunpack.c.l.b16 %v407
        %v680 = vunpack.c.h.b16 %v407
        %v681 = vunpack.c.l.b16 %v408
        %v682 = vunpack.c.h.b16 %v408
        %v683 = vunpack.c.l.b16 %v409
        %v684 = vunpack.c.h.b16 %v409
        %v685 = vunpack.c.l.b16 %v410
        %v686 = vunpack.c.h.b16 %v410
        %v687 = vunpack.c.l.b16 %v411
        %v688 = vunpack.c.h.b16 %v411
        %v689 = vunpack.c.l.b16 %v412
        %v690 = vunpack.c.h.b16 %v412
        %v691 = vunpack.c.l.b16 %v413
        %v692 = vunpack.c.h.b16 %v413
        %v693 = vunpack.c.l.b16 %v414
        %v694 = vunpack.c.h.b16 %v414
        %v695 = vunpack.c.l.b16 %v415
        %v696 = vunpack.c.h.b16 %v415
        %v697 = vunpack.c.l.b16 %v416
        %v698 = vunpack.c.h.b16 %v416
        %v699 = vunpack.c.l.b16 %v417
        %v700 = vunpack.c.h.b16 %v417
        %v701 = vunpack.c.l.b16 %v418
        %v702 = vunpack.c.h.b16 %v418
        %v703 = vunpack.c.l.b16 %v419
        %v704 = vunpack.c.h.b16 %v419
        %v705 = vunpack.c.l.b16 %v420
        %v706 = vunpack.c.h.b16 %v420
        %v707 = vunpack.c.l.b16 %v421
        %v708 = vunpack.c.h.b16 %v421
        %v709 = vunpack.c.l.b16 %v422
        %v710 = vunpack.c.h.b16 %v422
        %v711 = vunpack.c.l.b16 %v423
        %v712 = vunpack.c.h.b16 %v423
        %v713 = vunpack.c.l.b16 %v424
        %v714 = vunpack.c.h.b16 %v424
        %v715 = vunpack.c.l.b16 %v425
        %v716 = vunpack.c.h.b16 %v425
        %v717 = vunpack.c.l.b16 %v426
        %v718 = vunpack.c.h.b16 %v426
        %v719 = vunpack.c.l.b16 %v427
        %v720 = vunpack.c.h.b16 %v427
        %v721 = vunpack.c.l.b16 %v428
        %v722 = vunpack.c.h.b16 %v428
        %v723 = vunpack.c.l.b16 %v429
        %v724 = vunpack.c.h.b16 %v429
        %v725 = vunpack.c.l.b16 %v430
        %v726 = vunpack.c.h.b16 %v430
        %v727 = vunpack.c.l.b16 %v431
        %v728 = vunpack.c.h.b16 %v431
        %v729 = vunpack.c.l.b16 %v432
        %v730 = vunpack.c.h.b16 %v432
        %v731 = vunpack.c.l.b16 %v433
        %v732 = vunpack.c.h.b16 %v433
        %v733 = vunpack.c.l.b16 %v434
        %v734 = vunpack.c.h.b16 %v434
        %v735 = vunpack.c.l.b16 %v435
        %v736 = vunpack.c.h.b16 %v435
        %v737 = vunpack.c.l.b16 %v436
        %v738 = vunpack.c.h.b16 %v436
        %v739 = vunpack.c.l.b16 %v437
        %v740 = vunpack.c.h.b16 %v437
        %v741 = vunpack.c.l.b16 %v438
        %v742 = vunpack.c.h.b16 %v438
        %v743 = vunpack.c.l.b16 %v439
        %v744 = vunpack.c.h.b16 %v439
        %v745 = vunpack.c.l.b16 %v440
        %v746 = vunpack.c.h.b16 %v440
        %v747 = vunpack.c.l.b16 %v441
        %v748 = vunpack.c.h.b16 %v441
        %v749 = vunpack.c.l.b16 %v442
        %v750 = vunpack.c.h.b16 %v442
        %v751 = vunpack.c.l.b16 %v443
        %v752 = vunpack.c.h.b16 %v443
        %v753 = vunpack.c.l.b16 %v444
        %v754 = vunpack.c.h.b16 %v444
        %v755 = vunpack.c.l.b16 %v445
        %v756 = vunpack.c.h.b16 %v445
        %v757 = vunpack.c.l.b16 %v446
        %v758 = vunpack.c.h.b16 %v446
        %v759 = vunpack.c.l.b16 %v447
        %v760 = vunpack.c.h.b16 %v447
        %v761 = vunpack.c.l.b16 %v448
        %v762 = vunpack.c.h.b16 %v448
        %v763 = vunpack.c.l.b16 %v449
        %v764 = vunpack.c.h.b16 %v449
        %v765 = vunpack.c.l.b16 %v450
        %v766 = vunpack.c.h.b16 %v450
        %v767 = vunpack.c.l.b16 %v451
        %v768 = vunpack.c.h.b16 %v451
        %v769 = vunpack.c.l.b16 %v452
        %v770 = vunpack.c.h.b16 %v452
        %v771 = vunpack.c.l.b16 %v453
        %v772 = vunpack.c.h.b16 %v453
        %v773 = vunpack.c.l.b16 %v454
        %v774 = vunpack.c.h.b16 %v454
        %v775 = vunpack.c.l.b16 %v455
        %v776 = vunpack.c.h.b16 %v455
        %v777 = vunpack.c.l.b16 %v456
        %v778 = vunpack.c.h.b16 %v456
        %v779 = vunpack.c.l.b16 %v457
        %v780 = vunpack.c.h.b16 %v457
        %v781 = vunpack.c.l.b16 %v458
        %v782 = vunpack.c.h.b16 %v458
        %v783 = vunpack.c.l.b16 %v459
        %v784 = vunpack.c.h.b16 %v459
        %v785 = vunpack.c.l.b16 %v460
        %v786 = vunpack.c.h.b16 %v460
        %v787 = vunpack.c.l.b16 %v461
        %v788 = vunpack.c.h.b16 %v461
        %v789 = vunpack.c.l.b16 %v462
        %v790 = vunpack.c.h.b16 %v462
        %v791 = vunpack.c.l.b16 %v463
        %v792 = vunpack.c.h.b16 %v463
        %v793 = vunpack.c.l.b16 %v464
        %v794 = vunpack.c.h.b16 %v464
        %v795 = vpack.c.b16 %v611, %v603
        %v796 = vpack.c.b16 %v612, %v604
        %v797 = vpack.c.b16 %v613, %v605
        %v798 = vpack.c.b16 %v614, %v606
        %v799 = vpack.c.b16 %v615, %v607
        %v800 = vpack.c.b16 %v616, %v608
        %v801 = vpack.c.b16 %v617, %v609
        %v802 = vpack.c.b16 %v618, %v610
        %v803 = vpack.c.b16 %v627, %v619
        %v804 = vpack.c.b16 %v628, %v620
        %v805 = vpack.c.b16 %v629, %v621
        %v806 = vpack.c.b16 %v630, %v622
        %v807 = vpack.c.b16 %v631, %v623
        %v808 = vpack.c.b16 %v632, %v624
        %v809 = vpack.c.b16 %v633, %v625
        %v810 = vpack.c.b16 %v634, %v626
        %v811 = vpack.c.b16 %v643, %v635
        %v812 = vpack.c.b16 %v644, %v636
        %v813 = vpack.c.b16 %v645, %v637
        %v814 = vpack.c.b16 %v646, %v638
        %v815 = vpack.c.b16 %v647, %v639
        %v816 = vpack.c.b16 %v648, %v640
        %v817 = vpack.c.b16 %v649, %v641
        %v818 = vpack.c.b16 %v650, %v642
        %v819 = vpack.c.b16 %v659, %v651
        %v820 = vpack.c.b16 %v660, %v652
        %v821 = vpack.c.b16 %v661, %v653
        %v822 = vpack.c.b16 %v662, %v654
        %v823 = vpack.c.b16 %v663, %v655
        %v824 = vpack.c.b16 %v664, %v656
        %v825 = vpack.c.b16 %v665, %v657
        %v826 = vpack.c.b16 %v666, %v658
        %v827 = vpack.c.b16 %v675, %v667
        %v828 = vpack.c.b16 %v676, %v668
        %v829 = vpack.c.b16 %v677, %v669
        %v830 = vpack.c.b16 %v678, %v670
        %v831 = vpack.c.b16 %v679, %v671
        %v832 = vpack.c.b16 %v680, %v672
        %v833 = vpack.c.b16 %v681, %v673
        %v834 = vpack.c.b16 %v682, %v674
        %v835 = vpack.c.b16 %v691, %v683
        %v836 = vpack.c.b16 %v692, %v684
        %v837 = vpack.c.b16 %v693, %v685
        %v838 = vpack.c.b16 %v694, %v686
        %v839 = vpack.c.b16 %v695, %v687
        %v840 = vpack.c.b16 %v696, %v688
        %v841 = vpack.c.b16 %v697, %v689
        %v842 = vpack.c.b16 %v698, %v690
        %v843 = vpack.c.b16 %v707, %v699
        %v844 = vpack.c.b16 %v708, %v700
        %v845 = vpack.c.b16 %v709, %v701
        %v846 = vpack.c.b16 %v710, %v702
        %v847 = vpack.c.b16 %v711, %v703
        %v848 = vpack.c.b16 %v712, %v704
        %v849 = vpack.c.b16 %v713, %v705
        %v850 = vpack.c.b16 %v714, %v706
        %v851 = vpack.c.b16 %v723, %v715
        %v852 = vpack.c.b16 %v724, %v716
        %v853 = vpack.c.b16 %v725, %v717
        %v854 = vpack.c.b16 %v726, %v718
        %v855 = vpack.c.b16 %v727, %v719
        %v856 = vpack.c.b16 %v728, %v720
        %v857 = vpack.c.b16 %v729, %v721
        %v858 = vpack.c.b16 %v730, %v722
        %v859 = vpack.c.b16 %v739, %v731
        %v860 = vpack.c.b16 %v740, %v732
        %v861 = vpack.c.b16 %v741, %v733
        %v862 = vpack.c.b16 %v742, %v734
        %v863 = vpack.c.b16 %v743, %v735
        %v864 = vpack.c.b16 %v744, %v736
        %v865 = vpack.c.b16 %v745, %v737
        %v866 = vpack.c.b16 %v746, %v738
        %v867 = vpack.c.b16 %v755, %v747
        %v868 = vpack.c.b16 %v756, %v748
        %v869 = vpack.c.b16 %v757, %v749
        %v870 = vpack.c.b16 %v758, %v750
        %v871 = vpack.c.b16 %v759, %v751
        %v872 = vpack.c.b16 %v760, %v752
        %v873 = vpack.c.b16 %v761, %v753
        %v874 = vpack.c.b16 %v762, %v754
        %v875 = vpack.c.b16 %v771, %v763
        %v876 = vpack.c.b16 %v772, %v764
        %v877 = vpack.c.b16 %v773, %v765
        %v878 = vpack.c.b16 %v774, %v766
        %v879 = vpack.c.b16 %v775, %v767
        %v880 = vpack.c.b16 %v776, %v768
        %v881 = vpack.c.b16 %v777, %v769
        %v882 = vpack.c.b16 %v778, %v770
        %v883 = vpack.c.b16 %v787, %v779
        %v884 = vpack.c.b16 %v788, %v780
        %v885 = vpack.c.b16 %v789, %v781
        %v886 = vpack.c.b16 %v790, %v782
        %v887 = vpack.c.b16 %v791, %v783
        %v888 = vpack.c.b16 %v792, %v784
        %v889 = vpack.c.b16 %v793, %v785
        %v890 = vpack.c.b16 %v794, %v786
        %vm987 = vcmask 523264
        %v989 = vsel %vm987, %v368, 0
        %991 = vmatprep.subr.bf16.mxu0 %v852
        %992 = vmatpush1.bf16.msra.mxu0 %v851
        %993 = vmatprep.subr.bf16.mxu0 %v844
        %994 = vmatpush1.bf16.msra.mxu0 %v843
        %995 = vmatprep.subr.bf16.mxu0 %v836
        %996 = vmatpush1.bf16.msra.mxu0 %v835
        %997 = vmatprep.subr.bf16.mxu0 %v828
        %998 = vmatpush1.bf16.msra.mxu0 %v827
        %999 = vmatprep.subr.bf16.mxu0 %v820
        %1000 = vmatpush1.bf16.msra.mxu0 %v819
        %1001 = vmatprep.subr.bf16.mxu0 %v812
        %1002 = vmatpush1.bf16.msra.mxu0 %v811
        %1003 = vmatprep.subr.bf16.mxu0 %v804
        %1004 = vmatpush1.bf16.msra.mxu0 %v803
        %1005 = vmatprep.subr.bf16.mxu0 %v796
        %1006 = vmatpush1.bf16.msra.mxu0 %v795
        %1007 = vmatprep.subr.bf16.mxu0 0
        %1008 = vmatpush2.bf16.msra.mxu0 0
        %1009 = vmatprep.subr.bf16.mxu0 0
        %1010 = vmatpush2.bf16.msra.mxu0 0
        %1011 = vmatprep.subr.bf16.mxu0 0
        %1012 = vmatpush2.bf16.msra.mxu0 0
        %1013 = vmatprep.subr.bf16.mxu0 0
        %1014 = vmatpush2.bf16.msra.mxu0 0
        %1015 = vmatprep.subr.bf16.mxu0 %v884
        %1016 = vmatpush2.bf16.msra.mxu0 %v883
        %1017 = vmatprep.subr.bf16.mxu0 %v876
        %1018 = vmatpush2.bf16.msra.mxu0 %v875
        %1019 = vmatprep.subr.bf16.mxu0 %v868
        %1020 = vmatpush2.bf16.msra.mxu0 %v867
        %1021 = vmatprep.subr.bf16.mxu0 %v860
        %1022 = vmatpush2.bf16.msra.mxu0 %v859
        %1023 = vmatprep.mubr.bf16.mxu0 %v989
        %1024 = vmatmul.mubr.bf16.gmra.mxu0 %v367
        %v1025 = vpop.f32.mrf.mxu0
        %v1026 = vadd.f32 %v470, %v1025
        %v1027 = vpop.f32.mrf.mxu0
        %v1028 = vadd.f32 %v474, %v1027
        %v1029 = vpop.f32.mrf.mxu0
        %v1030 = vpop.f32.mrf.mxu0
        %1031 = vdwg.mxu0
        %1032 = vmatprep.subr.bf16.mxu0 %v854
        %1033 = vmatpush1.bf16.msra.mxu0 %v853
        %1034 = vmatprep.subr.bf16.mxu0 %v846
        %1035 = vmatpush1.bf16.msra.mxu0 %v845
        %1036 = vmatprep.subr.bf16.mxu0 %v838
        %1037 = vmatpush1.bf16.msra.mxu0 %v837
        %1038 = vmatprep.subr.bf16.mxu0 %v830
        %1039 = vmatpush1.bf16.msra.mxu0 %v829
        %1040 = vmatprep.subr.bf16.mxu0 %v822
        %1041 = vmatpush1.bf16.msra.mxu0 %v821
        %1042 = vmatprep.subr.bf16.mxu0 %v814
        %1043 = vmatpush1.bf16.msra.mxu0 %v813
        %1044 = vmatprep.subr.bf16.mxu0 %v806
        %1045 = vmatpush1.bf16.msra.mxu0 %v805
        %1046 = vmatprep.subr.bf16.mxu0 %v798
        %1047 = vmatpush1.bf16.msra.mxu0 %v797
        %1048 = vmatprep.subr.bf16.mxu0 0
        %1049 = vmatpush2.bf16.msra.mxu0 0
        %1050 = vmatprep.subr.bf16.mxu0 0
        %1051 = vmatpush2.bf16.msra.mxu0 0
        %1052 = vmatprep.subr.bf16.mxu0 0
        %1053 = vmatpush2.bf16.msra.mxu0 0
        %1054 = vmatprep.subr.bf16.mxu0 0
        %1055 = vmatpush2.bf16.msra.mxu0 0
        %1056 = vmatprep.subr.bf16.mxu0 %v886
        %1057 = vmatpush2.bf16.msra.mxu0 %v885
        %1058 = vmatprep.subr.bf16.mxu0 %v878
        %1059 = vmatpush2.bf16.msra.mxu0 %v877
        %1060 = vmatprep.subr.bf16.mxu0 %v870
        %1061 = vmatpush2.bf16.msra.mxu0 %v869
        %1062 = vmatprep.subr.bf16.mxu0 %v862
        %1063 = vmatpush2.bf16.msra.mxu0 %v861
        %1064 = vmatprep.mubr.bf16.mxu0 %v989
        %1065 = vmatmul.mubr.bf16.gmra.mxu0 %v367
        %v1066 = vpop.f32.mrf.mxu0
        %v1067 = vadd.f32 %v478, %v1066
        %v1068 = vpop.f32.mrf.mxu0
        %v1069 = vadd.f32 %v482, %v1068
        %v1070 = vpop.f32.mrf.mxu0
        %v1071 = vpop.f32.mrf.mxu0
        %1072 = vdwg.mxu0
        %1073 = vmatprep.subr.bf16.mxu0 %v856
        %1074 = vmatpush1.bf16.msra.mxu0 %v855
        %1075 = vmatprep.subr.bf16.mxu0 %v848
        %1076 = vmatpush1.bf16.msra.mxu0 %v847
        %1077 = vmatprep.subr.bf16.mxu0 %v840
        %1078 = vmatpush1.bf16.msra.mxu0 %v839
        %1079 = vmatprep.subr.bf16.mxu0 %v832
        %1080 = vmatpush1.bf16.msra.mxu0 %v831
        %1081 = vmatprep.subr.bf16.mxu0 %v824
        %1082 = vmatpush1.bf16.msra.mxu0 %v823
        %1083 = vmatprep.subr.bf16.mxu0 %v816
        %1084 = vmatpush1.bf16.msra.mxu0 %v815
        %1085 = vmatprep.subr.bf16.mxu0 %v808
        %1086 = vmatpush1.bf16.msra.mxu0 %v807
        %1087 = vmatprep.subr.bf16.mxu0 %v800
        %1088 = vmatpush1.bf16.msra.mxu0 %v799
        %1089 = vmatprep.subr.bf16.mxu0 0
        %1090 = vmatpush2.bf16.msra.mxu0 0
        %1091 = vmatprep.subr.bf16.mxu0 0
        %1092 = vmatpush2.bf16.msra.mxu0 0
        %1093 = vmatprep.subr.bf16.mxu0 0
        %1094 = vmatpush2.bf16.msra.mxu0 0
        %1095 = vmatprep.subr.bf16.mxu0 0
        %1096 = vmatpush2.bf16.msra.mxu0 0
        %1097 = vmatprep.subr.bf16.mxu0 %v888
        %1098 = vmatpush2.bf16.msra.mxu0 %v887
        %1099 = vmatprep.subr.bf16.mxu0 %v880
        %1100 = vmatpush2.bf16.msra.mxu0 %v879
        %1101 = vmatprep.subr.bf16.mxu0 %v872
        %1102 = vmatpush2.bf16.msra.mxu0 %v871
        %1103 = vmatprep.subr.bf16.mxu0 %v864
        %1104 = vmatpush2.bf16.msra.mxu0 %v863
        %1105 = vmatprep.mubr.bf16.mxu0 %v989
        %1106 = vmatmul.mubr.bf16.gmra.mxu0 %v367
        %v1107 = vpop.f32.mrf.mxu0
        %v1108 = vadd.f32 %v486, %v1107
        %v1109 = vpop.f32.mrf.mxu0
        %v1110 = vadd.f32 %v490, %v1109
        %v1111 = vpop.f32.mrf.mxu0
        %v1112 = vpop.f32.mrf.mxu0
        %1113 = vdwg.mxu0
        %1114 = vmatprep.subr.bf16.mxu0 %v858
        %1115 = vmatpush1.bf16.msra.mxu0 %v857
        %1116 = vmatprep.subr.bf16.mxu0 %v850
        %1117 = vmatpush1.bf16.msra.mxu0 %v849
        %1118 = vmatprep.subr.bf16.mxu0 %v842
        %1119 = vmatpush1.bf16.msra.mxu0 %v841
        %1120 = vmatprep.subr.bf16.mxu0 %v834
        %1121 = vmatpush1.bf16.msra.mxu0 %v833
        %1122 = vmatprep.subr.bf16.mxu0 %v826
        %1123 = vmatpush1.bf16.msra.mxu0 %v825
        %1124 = vmatprep.subr.bf16.mxu0 %v818
        %1125 = vmatpush1.bf16.msra.mxu0 %v817
        %1126 = vmatprep.subr.bf16.mxu0 %v810
        %1127 = vmatpush1.bf16.msra.mxu0 %v809
        %1128 = vmatprep.subr.bf16.mxu0 %v802
        %1129 = vmatpush1.bf16.msra.mxu0 %v801
        %1130 = vmatprep.subr.bf16.mxu0 0
        %1131 = vmatpush2.bf16.msra.mxu0 0
        %1132 = vmatprep.subr.bf16.mxu0 0
        %1133 = vmatpush2.bf16.msra.mxu0 0
        %1134 = vmatprep.subr.bf16.mxu0 0
        %1135 = vmatpush2.bf16.msra.mxu0 0
        %1136 = vmatprep.subr.bf16.mxu0 0
        %1137 = vmatpush2.bf16.msra.mxu0 0
        %1138 = vmatprep.subr.bf16.mxu0 %v890
        %1139 = vmatpush2.bf16.msra.mxu0 %v889
        %1140 = vmatprep.subr.bf16.mxu0 %v882
        %1141 = vmatpush2.bf16.msra.mxu0 %v881
        %1142 = vmatprep.subr.bf16.mxu0 %v874
        %1143 = vmatpush2.bf16.msra.mxu0 %v873
        %1144 = vmatprep.subr.bf16.mxu0 %v866
        %1145 = vmatpush2.bf16.msra.mxu0 %v865
        %1146 = vmatprep.mubr.bf16.mxu0 %v989
        %1147 = vmatmul.mubr.bf16.gmra.mxu0 %v367
        %v1148 = vpop.f32.mrf.mxu0
        %v1149 = vadd.f32 %v494, %v1148
        %v1150 = vpop.f32.mrf.mxu0
        %v1151 = vadd.f32 %v498, %v1150
        %v1152 = vpop.f32.mrf.mxu0
        %v1153 = vpop.f32.mrf.mxu0
        %1154 = vdwg.mxu0
        %v1155 = vld [vmem:[#allocation9] sm:$0x1f]
        %v1156 = vld [vmem:[#allocation9 + $0x8] sm:$0x1f]
        %v1157 = vld [vmem:[#allocation9 + $0x10] sm:$0x1f]
        %v1158 = vld [vmem:[#allocation9 + $0x18] sm:$0x1f]
        %v1159 = vld [vmem:[#allocation9 + $0x20] sm:$0x1f]
        %v1160 = vld [vmem:[#allocation9 + $0x28] sm:$0x1f]
        %v1161 = vld [vmem:[#allocation9 + $0x30] sm:$0x1f]
        %v1162 = vld [vmem:[#allocation9 + $0x38] sm:$0x1f]
        %v1163 = vld [vmem:[#allocation7] sm:$0xff]
        %v1172 = vcombine.low %v1155, %v1156
        %v1173 = vcombine.low %v1157, %v1158
        %v1174 = vcombine.low %v1159, %v1160
        %v1175 = vcombine.low %v1161, %v1162
        %v1177 = vunpack.c.l.s4 1966171168
        %v1178 = vunpack.c.0.s8 %v1177
        %v1179 = vlaneseq
        %v1180 = vshrl.u32 %v1179, 7
        %v1181 = vsub.s32 %v1178, %v1180
        %v1182 = vrot.slane %v1172, %v1181
        %v1184 = vunpack.c.l.s4 1966171168
        %v1185 = vunpack.c.0.s8 %v1184
        %v1186 = vlaneseq
        %v1187 = vshrl.u32 %v1186, 7
        %v1188 = vsub.s32 %v1185, %v1187
        %v1189 = vrot.slane %v1173, %v1188
        %v1191 = vunpack.c.l.s4 1966171168
        %v1192 = vunpack.c.0.s8 %v1191
        %v1193 = vlaneseq
        %v1194 = vshrl.u32 %v1193, 7
        %v1195 = vsub.s32 %v1192, %v1194
        %v1196 = vrot.slane %v1174, %v1195
        %v1198 = vunpack.c.l.s4 1966171168
        %v1199 = vunpack.c.0.s8 %v1198
        %v1200 = vlaneseq
        %v1201 = vshrl.u32 %v1200, 7
        %v1202 = vsub.s32 %v1199, %v1201
        %v1203 = vrot.slane %v1175, %v1202
        %v1204 = vcombine.low %v1182, %v1189
        %v1205 = vcombine.low %v1196, %v1203
        %v1207 = vunpack.c.l.s4 1966171168
        %v1208 = vunpack.c.0.s8 %v1207
        %v1209 = vlaneseq
        %v1210 = vshrl.u32 %v1209, 7
        %v1211 = vsub.s32 %v1208, %v1210
        %v1212 = vrot.slane %v1204, %v1211
        %v1214 = vunpack.c.l.s4 1966171168
        %v1215 = vunpack.c.0.s8 %v1214
        %v1216 = vlaneseq
        %v1217 = vshrl.u32 %v1216, 7
        %v1218 = vsub.s32 %v1215, %v1217
        %v1219 = vrot.slane %v1205, %v1218
        %v1220 = vcombine.low %v1212, %v1219
        %v1222 = vadd.f32 %v1163, %v1220
        %v1223 = vrot.slane %v1155, 1
        %v1224 = vrot.slane %v1156, 1
        %v1225 = vrot.slane %v1157, 1
        %v1226 = vrot.slane %v1158, 1
        %v1227 = vrot.slane %v1159, 1
        %v1228 = vrot.slane %v1160, 1
        %v1229 = vrot.slane %v1161, 1
        %v1230 = vrot.slane %v1162, 1
        %v1239 = vadd.f32 %v1026, %v1223
        %v1240 = vadd.f32 %v1028, %v1224
        %v1241 = vadd.f32 %v1067, %v1225
        %v1242 = vadd.f32 %v1069, %v1226
        %v1243 = vadd.f32 %v1108, %v1227
        %v1244 = vadd.f32 %v1110, %v1228
        %v1245 = vadd.f32 %v1149, %v1229
        %v1246 = vadd.f32 %v1151, %v1230
        %v1247 = vld [vmem:[%s5] sm:$0xff]
        %v1248 = vld [vmem:[#allocation10] sm:$0xff]
        %v1250 = vlaneseq
        %v1251 = vshrl.u32 %v1250, 7
        %v1252 = vsub.s32 0, %v1251
        %v1253 = vrot.slane %v1222, %v1252
        %v1254 = vlaneseq
        %v1255 = vshrl.u32 %v1254, 7
        %v1256 = vsub.s32 1, %v1255
        %v1257 = vrot.slane %v1222, %v1256
        %v1258 = vlaneseq
        %v1259 = vshrl.u32 %v1258, 7
        %v1260 = vsub.s32 2, %v1259
        %v1261 = vrot.slane %v1222, %v1260
        %v1262 = vlaneseq
        %v1263 = vshrl.u32 %v1262, 7
        %v1264 = vsub.s32 3, %v1263
        %v1265 = vrot.slane %v1222, %v1264
        %v1266 = vlaneseq
        %v1267 = vshrl.u32 %v1266, 7
        %v1268 = vsub.s32 4, %v1267
        %v1269 = vrot.slane %v1222, %v1268
        %v1270 = vlaneseq
        %v1271 = vshrl.u32 %v1270, 7
        %v1272 = vsub.s32 5, %v1271
        %v1273 = vrot.slane %v1222, %v1272
        %v1274 = vlaneseq
        %v1275 = vshrl.u32 %v1274, 7
        %v1276 = vsub.s32 6, %v1275
        %v1277 = vrot.slane %v1222, %v1276
        %v1278 = vlaneseq
        %v1279 = vshrl.u32 %v1278, 7
        %v1280 = vsub.s32 7, %v1279
        %v1281 = vrot.slane %v1222, %v1280
        %vm1290 = vcmask 1040384
        %v1291 = vsel %vm1290, %v1253, 0.0
        %v1292 = vsel %vm1290, %v1257, 0.0
        %v1293 = vadd.f32 %v1291, %v1292
        %v1294 = vsel %vm1290, %v1261, 0.0
        %v1295 = vadd.f32 %v1293, %v1294
        %v1296 = vsel %vm1290, %v1265, 0.0
        %v1297 = vadd.f32 %v1295, %v1296
        %v1298 = vsel %vm1290, %v1269, 0.0
        %v1299 = vadd.f32 %v1297, %v1298
        %v1300 = vsel %vm1290, %v1273, 0.0
        %v1301 = vadd.f32 %v1299, %v1300
        %v1302 = vsel %vm1290, %v1277, 0.0
        %v1303 = vadd.f32 %v1301, %v1302
        %v1304 = vsel %vm1290, %v1281, 0.0
        %v1305 = vadd.f32 %v1303, %v1304
        %1306 = vadd.xlane.f32.xlu0 %v1305
        %v1307 = vpop.xlane.xlu0 %1306
        %v1308 = vrcp.pop 1024.0
        %v1309 = vmul.f32 %v1307, %v1308
        %v1311 = vlaneseq
        %v1312 = vshrl.u32 %v1311, 7
        %v1313 = vsub.s32 0, %v1312
        %v1314 = vrot.slane %v1309, %v1313
        %v1316 = vsub.f32 %v1222, %v1314
        %v1317 = vmul.f32 %v1316, %v1316
        %v1319 = vlaneseq
        %v1320 = vshrl.u32 %v1319, 7
        %v1321 = vsub.s32 0, %v1320
        %v1322 = vrot.slane %v1317, %v1321
        %v1323 = vlaneseq
        %v1324 = vshrl.u32 %v1323, 7
        %v1325 = vsub.s32 1, %v1324
        %v1326 = vrot.slane %v1317, %v1325
        %v1327 = vlaneseq
        %v1328 = vshrl.u32 %v1327, 7
        %v1329 = vsub.s32 2, %v1328
        %v1330 = vrot.slane %v1317, %v1329
        %v1331 = vlaneseq
        %v1332 = vshrl.u32 %v1331, 7
        %v1333 = vsub.s32 3, %v1332
        %v1334 = vrot.slane %v1317, %v1333
        %v1335 = vlaneseq
        %v1336 = vshrl.u32 %v1335, 7
        %v1337 = vsub.s32 4, %v1336
        %v1338 = vrot.slane %v1317, %v1337
        %v1339 = vlaneseq
        %v1340 = vshrl.u32 %v1339, 7
        %v1341 = vsub.s32 5, %v1340
        %v1342 = vrot.slane %v1317, %v1341
        %v1343 = vlaneseq
        %v1344 = vshrl.u32 %v1343, 7
        %v1345 = vsub.s32 6, %v1344
        %v1346 = vrot.slane %v1317, %v1345
        %v1347 = vlaneseq
        %v1348 = vshrl.u32 %v1347, 7
        %v1349 = vsub.s32 7, %v1348
        %v1350 = vrot.slane %v1317, %v1349
        %v1359 = vsel %vm1290, %v1322, 0.0
        %v1360 = vsel %vm1290, %v1326, 0.0
        %v1361 = vadd.f32 %v1359, %v1360
        %v1362 = vsel %vm1290, %v1330, 0.0
        %v1363 = vadd.f32 %v1361, %v1362
        %v1364 = vsel %vm1290, %v1334, 0.0
        %v1365 = vadd.f32 %v1363, %v1364
        %v1366 = vsel %vm1290, %v1338, 0.0
        %v1367 = vadd.f32 %v1365, %v1366
        %v1368 = vsel %vm1290, %v1342, 0.0
        %v1369 = vadd.f32 %v1367, %v1368
        %v1370 = vsel %vm1290, %v1346, 0.0
        %v1371 = vadd.f32 %v1369, %v1370
        %v1372 = vsel %vm1290, %v1350, 0.0
        %v1373 = vadd.f32 %v1371, %v1372
        %1374 = vadd.xlane.f32.xlu0 %v1373
        %v1375 = vpop.xlane.xlu0 %1374
        %v1376 = vmul.f32 %v1375, %v1308
        %v1377 = vadd.f32 %v1376, 1e-05
        %v1378 = vrsqrt.pop %v1377
        %v1380 = vlaneseq
        %v1381 = vshrl.u32 %v1380, 7
        %v1382 = vsub.s32 0, %v1381
        %v1383 = vrot.slane %v1378, %v1382
        %v1385 = vmul.f32 %v1316, %v1383
        %v1386 = vmul.f32 %v1385, %v1247
        %v1387 = vadd.f32 %v1386, %v1248
        %1388 = vst [vmem:[%s361] ss:$8 sm:$0xf] %v1387
        %1389 = vst [vmem:[%s361] ss:$8 sm:$0xf0] %v1387
        %vm1390 = vcmask 1043456
        %v1391 = vsel %vm1390, %v1239, 0.0
        %v1392 = vsel %vm1390, %v1240, 0.0
        %v1393 = vadd.f32 %v1391, %v1392
        %v1394 = vsel %vm1390, %v1241, 0.0
        %v1395 = vadd.f32 %v1393, %v1394
        %v1396 = vsel %vm1390, %v1242, 0.0
        %v1397 = vadd.f32 %v1395, %v1396
        %v1398 = vsel %vm1390, %v1243, 0.0
        %v1399 = vadd.f32 %v1397, %v1398
        %v1400 = vsel %vm1390, %v1244, 0.0
        %v1401 = vadd.f32 %v1399, %v1400
        %v1402 = vsel %vm1390, %v1245, 0.0
        %v1403 = vadd.f32 %v1401, %v1402
        %v1404 = vsel %vm1390, %v1246, 0.0
        %v1405 = vadd.f32 %v1403, %v1404
        %1406 = vadd.xlane.f32.xlu0 %v1405
        %v1407 = vpop.xlane.xlu0 %1406
        %v1408 = vmul.f32 %v1407, %v1308
        %v1409 = vsub.f32 %v1239, %v1408
        %v1410 = vsub.f32 %v1240, %v1408
        %v1411 = vsub.f32 %v1241, %v1408
        %v1412 = vsub.f32 %v1242, %v1408
        %v1413 = vsub.f32 %v1243, %v1408
        %v1414 = vsub.f32 %v1244, %v1408
        %v1415 = vsub.f32 %v1245, %v1408
        %v1416 = vsub.f32 %v1246, %v1408
        %v1417 = vmul.f32 %v1409, %v1409
        %v1418 = vmul.f32 %v1410, %v1410
        %v1419 = vmul.f32 %v1411, %v1411
        %v1420 = vmul.f32 %v1412, %v1412
        %v1421 = vmul.f32 %v1413, %v1413
        %v1422 = vmul.f32 %v1414, %v1414
        %v1423 = vmul.f32 %v1415, %v1415
        %v1424 = vmul.f32 %v1416, %v1416
        %v1425 = vsel %vm1390, %v1417, 0.0
        %v1426 = vsel %vm1390, %v1418, 0.0
        %v1427 = vadd.f32 %v1425, %v1426
        %v1428 = vsel %vm1390, %v1419, 0.0
        %v1429 = vadd.f32 %v1427, %v1428
        %v1430 = vsel %vm1390, %v1420, 0.0
        %v1431 = vadd.f32 %v1429, %v1430
        %v1432 = vsel %vm1390, %v1421, 0.0
        %v1433 = vadd.f32 %v1431, %v1432
        %v1434 = vsel %vm1390, %v1422, 0.0
        %v1435 = vadd.f32 %v1433, %v1434
        %v1436 = vsel %vm1390, %v1423, 0.0
        %v1437 = vadd.f32 %v1435, %v1436
        %v1438 = vsel %vm1390, %v1424, 0.0
        %v1439 = vadd.f32 %v1437, %v1438
        %1440 = vadd.xlane.f32.xlu0 %v1439
        %v1441 = vpop.xlane.xlu0 %1440
        %v1442 = vmul.f32 %v1441, %v1308
        %v1443 = vadd.f32 %v1442, 1e-05
        %v1444 = vrsqrt.pop %v1443
        %v1445 = vmul.f32 %v1409, %v1444
        %v1446 = vmul.f32 %v1410, %v1444
        %v1447 = vmul.f32 %v1411, %v1444
        %v1448 = vmul.f32 %v1412, %v1444
        %v1449 = vmul.f32 %v1413, %v1444
        %v1450 = vmul.f32 %v1414, %v1444
        %v1451 = vmul.f32 %v1415, %v1444
        %v1452 = vmul.f32 %v1416, %v1444
        %v1454 = vlaneseq
        %v1455 = vshrl.u32 %v1454, 7
        %v1456 = vsub.s32 0, %v1455
        %v1457 = vrot.slane %v1247, %v1456
        %v1458 = vlaneseq
        %v1459 = vshrl.u32 %v1458, 7
        %v1460 = vsub.s32 1, %v1459
        %v1461 = vrot.slane %v1247, %v1460
        %v1462 = vlaneseq
        %v1463 = vshrl.u32 %v1462, 7
        %v1464 = vsub.s32 2, %v1463
        %v1465 = vrot.slane %v1247, %v1464
        %v1466 = vlaneseq
        %v1467 = vshrl.u32 %v1466, 7
        %v1468 = vsub.s32 3, %v1467
        %v1469 = vrot.slane %v1247, %v1468
        %v1470 = vlaneseq
        %v1471 = vshrl.u32 %v1470, 7
        %v1472 = vsub.s32 4, %v1471
        %v1473 = vrot.slane %v1247, %v1472
        %v1474 = vlaneseq
        %v1475 = vshrl.u32 %v1474, 7
        %v1476 = vsub.s32 5, %v1475
        %v1477 = vrot.slane %v1247, %v1476
        %v1478 = vlaneseq
        %v1479 = vshrl.u32 %v1478, 7
        %v1480 = vsub.s32 6, %v1479
        %v1481 = vrot.slane %v1247, %v1480
        %v1482 = vlaneseq
        %v1483 = vshrl.u32 %v1482, 7
        %v1484 = vsub.s32 7, %v1483
        %v1485 = vrot.slane %v1247, %v1484
        %v1494 = vmul.f32 %v1445, %v1457
        %v1495 = vmul.f32 %v1446, %v1461
        %v1496 = vmul.f32 %v1447, %v1465
        %v1497 = vmul.f32 %v1448, %v1469
        %v1498 = vmul.f32 %v1449, %v1473
        %v1499 = vmul.f32 %v1450, %v1477
        %v1500 = vmul.f32 %v1451, %v1481
        %v1501 = vmul.f32 %v1452, %v1485
        %v1503 = vlaneseq
        %v1504 = vshrl.u32 %v1503, 7
        %v1505 = vsub.s32 0, %v1504
        %v1506 = vrot.slane %v1248, %v1505
        %v1507 = vlaneseq
        %v1508 = vshrl.u32 %v1507, 7
        %v1509 = vsub.s32 1, %v1508
        %v1510 = vrot.slane %v1248, %v1509
        %v1511 = vlaneseq
        %v1512 = vshrl.u32 %v1511, 7
        %v1513 = vsub.s32 2, %v1512
        %v1514 = vrot.slane %v1248, %v1513
        %v1515 = vlaneseq
        %v1516 = vshrl.u32 %v1515, 7
        %v1517 = vsub.s32 3, %v1516
        %v1518 = vrot.slane %v1248, %v1517
        %v1519 = vlaneseq
        %v1520 = vshrl.u32 %v1519, 7
        %v1521 = vsub.s32 4, %v1520
        %v1522 = vrot.slane %v1248, %v1521
        %v1523 = vlaneseq
        %v1524 = vshrl.u32 %v1523, 7
        %v1525 = vsub.s32 5, %v1524
        %v1526 = vrot.slane %v1248, %v1525
        %v1527 = vlaneseq
        %v1528 = vshrl.u32 %v1527, 7
        %v1529 = vsub.s32 6, %v1528
        %v1530 = vrot.slane %v1248, %v1529
        %v1531 = vlaneseq
        %v1532 = vshrl.u32 %v1531, 7
        %v1533 = vsub.s32 7, %v1532
        %v1534 = vrot.slane %v1248, %v1533
        %v1543 = vadd.f32 %v1494, %v1506
        %v1544 = vadd.f32 %v1495, %v1510
        %v1545 = vadd.f32 %v1496, %v1514
        %v1546 = vadd.f32 %v1497, %v1518
        %v1547 = vadd.f32 %v1498, %v1522
        %v1548 = vadd.f32 %v1499, %v1526
        %v1549 = vadd.f32 %v1500, %v1530
        %v1550 = vadd.f32 %v1501, %v1534
        %v1559 = vrot.slane %v1543, 7
        %v1560 = vrot.slane %v1544, 7
        %v1561 = vrot.slane %v1545, 7
        %v1562 = vrot.slane %v1546, 7
        %v1563 = vrot.slane %v1547, 7
        %v1564 = vrot.slane %v1548, 7
        %v1565 = vrot.slane %v1549, 7
        %v1566 = vrot.slane %v1550, 7
        %1575 = vst [vmem:[%s361] sm:$0x1e] %v1559
        %1576 = vst [vmem:[%s361 + $0x8] sm:$0x1e] %v1560
        %1577 = vst [vmem:[%s361 + $0x10] sm:$0x1e] %v1561
        %1578 = vst [vmem:[%s361 + $0x18] sm:$0x1e] %v1562
        %1579 = vst [vmem:[%s361 + $0x20] sm:$0x1e] %v1563
        %1580 = vst [vmem:[%s361 + $0x28] sm:$0x1e] %v1564
        %1581 = vst [vmem:[%s361 + $0x30] sm:$0x1e] %v1565
        %1582 = vst [vmem:[%s361 + $0x38] sm:$0x1e] %v1566
        %p1583 = scmp.lt.s32.totalorder %s24, 1
        %s1584 = scalar_select %p1583, %s24, 1
        %s1585 = smul.addr %s1584, 8
        %s1586 = smul.addr %s1585, 8
        %s1587 = scalar_lea.vmem %s7, %s1586
        // Predicated region
        $region73: #{tpu_custom_call.1} parent=47 // pred_check
          %p1588 = pneg %p194
        $region74: #{tpu_custom_call.1} parent=47 // pred_check_branch
          %1590 = sbr.rel (%p1588) target = $region76
        $region75: #{tpu_custom_call.1} parent=47 // pred_region
          _
        $region76: #{tpu_custom_call.1} parent=47 // pred_fallthru
          _
      $region48: #{tpu_custom_call.1} parent=5 // pred_fallthru
        _
      %p1591 = scmp.le.s32.totalorder 2, %s19
      // Predicated region
      $region77: #{tpu_custom_call.1} parent=5 // pred_check
        %p1592 = pneg %p1591
      $region78: #{tpu_custom_call.1} parent=5 // pred_check_branch
        %1594 = sbr.rel (%p1592) target = $region80
      $region79: #{tpu_custom_call.1} parent=5 // pred_region
        %s1595 = ssub.s32 %s19, 2
        // Predicated region
        $region81: #{tpu_custom_call.1} parent=79 // pred_check
          %p1596 = pneg %p200
        $region82: #{tpu_custom_call.1} parent=79 // pred_check_branch
          %1598 = sbr.rel (%p1596) target = $region84
        $region83: #{tpu_custom_call.1} parent=79 // pred_region
          %p1599 = scmp.lt.s32.totalorder %s25, 1
          %s1600 = scalar_select %p1599, %s25, 1
          %s1601 = smul.addr %s1600, 8
          %s1602 = smul.addr %s1601, 8
          %s1603 = scalar_lea.vmem %s7, %s1602
        $region84: #{tpu_custom_call.1} parent=79 // pred_fallthru
          _
      $region80: #{tpu_custom_call.1} parent=5 // pred_fallthru
        _
    $region6: #{tpu_custom_call.1} parent=1 // loop_footer
      %s23 = sadd.s32 1, %s19
    $region7: #{tpu_custom_call.1} parent=1 // loop_footer_branch
      %18 = sbr.rel target = $region3
    $region8: #{tpu_custom_call.1} parent=1 // loop_exit
      _
    %1604 = vsyncpa [#allocation3], 1
    %s1605 = scalar_lea.sflag [#allocation3], 1
    %1606 = vsyncpa %s1605, 1
    %1607 = vsyncpa [#allocation5], 1
    %1608 = vsyncpa [#allocation8], 1
    %1609 = vsyncpa [#allocation11], 1

</llo_original>
